<compile_context>
chip_gen: v7x
topology: tpu7x:2x2x1
jax: 0.10.0
libtpu: 0.0.40
codegen_flags: <defaults>
</compile_context>

<pallas_src>
import functools

import numpy as np
import jax
import jax.numpy as jnp
from jax.experimental import pallas as pl
from jax.experimental.pallas import tpu as pltpu


def _round_up(x, m):
    return (x + m - 1) // m * m


def _vmem_cap_bytes():
    """Device VMEM capacity minus headroom; safe fallback for v7x (64 MiB)."""
    try:
        return int(pltpu.get_tpu_info().vmem_capacity_bytes) - (8 << 20)
    except Exception:
        return 56 << 20


def _pick_strip_rows(rows, per_row_bytes, budget_bytes):
    """Largest divisor of `rows` whose per-strip footprint fits the budget.

    Also caps at rows // 2 when rows >= 16 so the strip grid axis has at
    least two steps (both v7x TensorCores get work even when N == 1).
    """
    limit = max(1, budget_bytes // max(int(per_row_bytes), 1))
    if rows >= 16:
        limit = min(limit, rows // 2)
    best = 1
    for d in range(1, rows + 1):
        if rows % d == 0 and d <= limit:
            best = d
    return best


# ---------------------------------------------------------------------------
# Pass 1: phase-folded conv over one H-strip + per-strip statistics.
# ---------------------------------------------------------------------------
def _conv_stats_kernel(x_ref, w_ref, y_ref, st_ref, *, offs, Hs, Wv, Cin, Ncols):
    """x_ref : (Hs + halo, Wpad, Cin)  bf16 padded input strip
       w_ref : (ntaps, Cin, Ncols)     bf16 effective weights, columns packed
                                       as (phi, phj, cout), zero-padded to Ncols
       y_ref : (Hs, Wv, Ncols)         bf16 raw (un-normalized) conv output
       st_ref: (2, Ncols)              f32 [sum ; sum of squares] over strip
    """
    acc = None
    # Per-tap accumulated matmuls (no ntaps-wide im2col lane-concat temp).
    for t, (dh, dw) in enumerate(offs):
        lhs = x_ref[dh:dh + Hs, dw:dw + Wv, :].reshape(Hs * Wv, Cin)
        part = jnp.dot(lhs, w_ref[t], preferred_element_type=jnp.float32)
        acc = part if acc is None else acc + part
    y_ref[...] = acc.reshape(Hs, Wv, Ncols).astype(y_ref.dtype)
    # Stats from the exact f32 accumulator (not the bf16-rounded output).
    st_ref[0:1, :] = jnp.sum(acc, axis=0, keepdims=True)
    st_ref[1:2, :] = jnp.sum(acc * acc, axis=0, keepdims=True)


# ---------------------------------------------------------------------------
# Pass 2: fused InstanceNorm affine + ReLU over one H-strip.
# ---------------------------------------------------------------------------
def _norm_relu_kernel(y_ref, sc_ref, sh_ref, o_ref, *, Ctot):
    """y_ref : (Hs, Wv, Ncols) bf16 raw conv strip
       sc_ref/sh_ref : (1, Ctot) f32 per-column scale / shift (this image)
       o_ref : (Hs, Wv, Ctot)    final dtype output (columns = phi,phj,cout)
    """
    y = y_ref[:, :, :Ctot].astype(jnp.float32)
    o_ref[...] = jnp.maximum(y * sc_ref[...] + sh_ref[...], 0.0).astype(o_ref.dtype)


def upsample_conv_inst_relu(x_nchw, weight, bias, gamma, beta, *,
                            kernel_size, stride=1, upsample=None, eps=1e-5):
    """weight: (Cout, Cin, KH, KW) torch layout; bias/gamma/beta: (Cout,)."""
    # Conv bias is mathematically cancelled by InstanceNorm's per-channel mean
    # subtraction, so it is intentionally unused.
    del bias
    assert stride == 1, "ReCoNet upsample-conv layers use stride=1"
    N, Cin, H, W = x_nchw.shape
    Cout = weight.shape[0]
    KH = KW = int(kernel_size)
    p = KH // 2
    up = int(upsample) if upsample else 1
    fused = (up > 1) and (p < up)            # phase trick valid when pad < scale

    x = jnp.transpose(x_nchw, (0, 2, 3, 1)).astype(jnp.bfloat16)          # NHWC
    w_hwio = jnp.transpose(weight, (2, 3, 1, 0)).astype(jnp.float32)      # (KH,KW,Cin,Cout)

    if fused:
        s = up
        d_min = -((p + s - 1) // s)                      # floor(-p/s)
        d_max = (s - 1 + KH - 1 - p) // s
        nt = d_max - d_min + 1                           # base-res taps per axis
        # Fold each (phase, k-tap) onto the base-resolution offset it reads;
        # taps of a phase landing on the same offset are summed.
        sel = np.zeros((nt * nt, s * s, KH * KW), np.float32)
        for phi in range(s):
            for phj in range(s):
                for kh in range(KH):
                    for kw in range(KW):
                        dh = (phi + kh - p) // s - d_min
                        dw = (phj + kw - p) // s - d_min
                        sel[dh * nt + dw, phi * s + phj, kh * KW + kw] = 1.0
        w_k = w_hwio.reshape(KH * KW, Cin, Cout)
        w_eff = jnp.einsum('tpk,kio->tipo', jnp.asarray(sel), w_k)
        w_eff = w_eff.reshape(nt * nt, Cin, s * s * Cout)
        # Reflect-pad-after-upsample == edge pad at base resolution (pad < scale).
        xe = jnp.pad(x, ((0, 0), (-d_min, d_max), (-d_min, d_max), (0, 0)),
                     mode='edge')
        Hb, Wb = H, W
    else:
        s = 1
        if up > 1:     # rare fallback (pad >= scale): materialize the upsample
            x = jnp.repeat(jnp.repeat(x, up, axis=1), up, axis=2)
        xe = jnp.pad(x, ((0, 0), (p, p), (p, p), (0, 0)), mode='reflect')
        nt = KH
        w_eff = w_hwio.reshape(KH * KW, Cin, Cout)
        Hb, Wb = xe.shape[1] - KH + 1, xe.shape[2] - KW + 1

    ntaps = nt * nt
    halo = nt - 1
    offs = tuple((dh, dw) for dh in range(nt) for dw in range(nt))
    Ctot = s * s * Cout                                 # real matmul-N columns
    Ncols = _round_up(Ctot, 128)                        # lane-dense matmul N
    w_eff = jnp.pad(w_eff, ((0, 0), (0, 0), (0, Ncols - Ctot))).astype(jnp.bfloat16)
    Wpad = Wb + halo
    out_itemsize = np.dtype(x_nchw.dtype).itemsize

    # ---- strip height from a VMEM budget (double-buffered blocks + f32 acc).
    in_row = _round_up(Wpad, 16) * _round_up(Cin, 128) * 2          # bf16, lane pad
    y_row = _round_up(Wb, 16) * Ncols * 2                           # bf16
    acc_row = _round_up(Wb, 8) * Ncols * 4                          # f32
    out_row = _round_up(Wb, 8) * _round_up(Ctot, 128) * out_itemsize
    per_row = max(2 * in_row + 2 * y_row + acc_row,                 # pass 1
                  2 * y_row + 2 * out_row + acc_row)                # pass 2
    Hs = _pick_strip_rows(Hb, per_row, budget_bytes=12 << 20)
    nsr = Hb // Hs

    # Pre-slice the padded input into halo-overlapped strips so the BlockSpec
    # blocks stay non-overlapping and fully auto-pipelined (no manual DMA).
    x_strips = jnp.stack(
        [xe[:, i * Hs:i * Hs + Hs + halo] for i in range(nsr)], axis=1)
    # x_strips: (N, nsr, Hs+halo, Wpad, Cin)

    # ---- VMEM limits: actual footprint (including the f32 acc), clamped to
    #      the device capacity minus headroom (v7x: 64 MiB physical).
    vmem_cap = _vmem_cap_bytes()
    w_bytes = ntaps * _round_up(Cin, 16) * Ncols * 2
    est1 = (2 * (Hs + halo) * in_row + 2 * Hs * y_row + Hs * acc_row
            + 2 * w_bytes + 4 * 8 * Ncols * 4 + (2 << 20))
    est2 = 2 * Hs * y_row + 2 * Hs * out_row + Hs * acc_row + (2 << 20)
    vmem1 = int(min(max(32 << 20, int(est1 * 1.5)), vmem_cap))
    vmem2 = int(min(max(32 << 20, int(est2 * 1.5)), vmem_cap))

    # ------------------------------------------------------------------ pass 1
    kern1 = functools.partial(_conv_stats_kernel, offs=offs, Hs=Hs, Wv=Wb,
                              Cin=Cin, Ncols=Ncols)
    y_raw, st = pl.pallas_call(
        kern1,
        out_shape=(jax.ShapeDtypeStruct((N, Hb, Wb, Ncols), jnp.bfloat16),
                   jax.ShapeDtypeStruct((N, nsr, 2, Ncols), jnp.float32)),
        grid_spec=pltpu.PrefetchScalarGridSpec(
            num_scalar_prefetch=0,
            grid=(N, nsr),
            in_specs=[
                pl.BlockSpec((None, None, Hs + halo, Wpad, Cin),
                             lambda n, t: (n, t, 0, 0, 0)),
                pl.BlockSpec((ntaps, Cin, Ncols), lambda n, t: (0, 0, 0)),
            ],
            out_specs=(
                pl.BlockSpec((None, Hs, Wb, Ncols), lambda n, t: (n, t, 0, 0)),
                pl.BlockSpec((None, None, 2, Ncols), lambda n, t: (n, t, 0, 0)),
            ),
        ),
        compiler_params=pltpu.CompilerParams(
            dimension_semantics=("parallel", "parallel"),
            vmem_limit_bytes=vmem1),
    )(x_strips, w_eff)

    # ---- tiny per-(n, cout) reduction over strips and phases (f32, XLA).
    n_pix = float(Hb * Wb * s * s)
    sums = jnp.sum(st, axis=1)[:, :, :Ctot]                  # (N, 2, Ctot)
    sums = sums.reshape(N, 2, s * s, Cout).sum(axis=2)       # (N, 2, Cout)
    mean = sums[:, 0] / n_pix
    # Single-pass E[x^2]-E[x]^2 in f32 from the exact f32 accumulator; clamp
    # guards tiny negative values from cancellation.
    var = jnp.maximum(sums[:, 1] / n_pix - mean * mean, 0.0)
    inv = jax.lax.rsqrt(var + float(eps))
    scale = gamma.astype(jnp.float32)[None, :] * inv         # (N, Cout)
    shift = beta.astype(jnp.float32)[None, :] - mean * scale
    scale_cols = jnp.tile(scale, (1, s * s)).reshape(N, 1, Ctot)
    shift_cols = jnp.tile(shift, (1, s * s)).reshape(N, 1, Ctot)

    # ------------------------------------------------------------------ pass 2
    kern2 = functools.partial(_norm_relu_kernel, Ctot=Ctot)
    out_p = pl.pallas_call(
        kern2,
        out_shape=jax.ShapeDtypeStruct((N, Hb, Wb, Ctot), x_nchw.dtype),
        grid_spec=pltpu.PrefetchScalarGridSpec(
            num_scalar_prefetch=0,
            grid=(N, nsr),
            in_specs=[
                pl.BlockSpec((None, Hs, Wb, Ncols), lambda n, t: (n, t, 0, 0)),
                pl.BlockSpec((None, 1, Ctot), lambda n, t: (n, 0, 0)),
                pl.BlockSpec((None, 1, Ctot), lambda n, t: (n, 0, 0)),
            ],
            out_specs=pl.BlockSpec((None, Hs, Wb, Ctot),
                                   lambda n, t: (n, t, 0, 0)),
        ),
        compiler_params=pltpu.CompilerParams(
            dimension_semantics=("parallel", "parallel"),
            vmem_limit_bytes=vmem2),
    )(y_raw, scale_cols, shift_cols)

    # Depth-to-space (phase unshuffle) + NCHW, once, on the tightly packed
    # (N, Hb, Wb, s*s*Cout) tensor (no padded columns to slice off).
    out = out_p.reshape(N, Hb, Wb, s, s, Cout)
    out = jnp.transpose(out, (0, 1, 3, 2, 4, 5)).reshape(N, Hb * s, Wb * s, Cout)
    return jnp.transpose(out, (0, 3, 1, 2))


def _reference(x, weight, bias, gamma, beta, ks, up, eps=1e-5):
    """Pure-JAX f32 reference mirroring the PyTorch module."""
    xu = jnp.repeat(jnp.repeat(x, up, axis=2), up, axis=3) if up else x
    pad = ks // 2
    xp = jnp.pad(xu, ((0, 0), (0, 0), (pad, pad), (pad, pad)), mode='reflect')
    y = jax.lax.conv_general_dilated(
        xp, weight, window_strides=(1, 1), padding='VALID',
        dimension_numbers=('NCHW', 'OIHW', 'NCHW'))
    y = y + bias[None, :, None, None]
    mean = y.mean(axis=(2, 3), keepdims=True)
    var = ((y - mean) ** 2).mean(axis=(2, 3), keepdims=True)
    y = (y - mean) / jnp.sqrt(var + eps)
    y = y * gamma[None, :, None, None] + beta[None, :, None, None]
    return jnp.maximum(y, 0.0)


if __name__ == "__main__":
    key = jax.random.PRNGKey(0)
    k1, k2, k3, k4, k5 = jax.random.split(key, 5)

    N, Cin, H, W = 2, 4, 16, 16
    Cout, ks, stride, up = 8, 3, 1, 2

    x = jax.random.normal(k1, (N, Cin, H, W), jnp.float32)
    weight = 0.1 * jax.random.normal(k2, (Cout, Cin, ks, ks), jnp.float32)
    bias = 0.1 * jax.random.normal(k3, (Cout,), jnp.float32)
    gamma = 1.0 + 0.1 * jax.random.normal(k4, (Cout,), jnp.float32)
    beta = 0.1 * jax.random.normal(k5, (Cout,), jnp.float32)

    # Fused upsample path (ReCoNet configuration: k=3, upsample=2).
    out = upsample_conv_inst_relu(x, weight, bias, gamma, beta,
                                  kernel_size=ks, stride=stride, upsample=up)
    out = jax.block_until_ready(out)
    ref = _reference(x, weight, bias, gamma, beta, ks, up)
    assert out.shape == (N, Cout, H * up, W * up), out.shape
    err = float(jnp.max(jnp.abs(out - ref)))
    assert err < 5e-2, err

    # No-upsample path (same kernels, s=1, reflection-padded plain conv).
    out2 = upsample_conv_inst_relu(x, weight, bias, gamma, beta,
                                   kernel_size=ks, stride=stride, upsample=None)
    out2 = jax.block_until_ready(out2)
    ref2 = _reference(x, weight, bias, gamma, beta, ks, None)
    assert out2.shape == (N, Cout, H, W), out2.shape
    err2 = float(jnp.max(jnp.abs(out2 - ref2)))
    assert err2 < 5e-2, err2

    print("KERNEL_OK")
</pallas_src>

<mosaic_0001>
module attributes {stable_mosaic.version = 11 : i64} {
  func.func @_conv_stats_kernel(%arg0: i32, %arg1: i32, %arg2: memref<1x1x10x18x4xbf16, #tpu.memory_space<vmem>>, %arg3: memref<9x4x128xbf16, #tpu.memory_space<vmem>>, %arg4: memref<1x8x16x128xbf16, #tpu.memory_space<vmem>>, %arg5: memref<1x1x2x128xf32, #tpu.memory_space<vmem>>) attributes {dimension_semantics = [#tpu.dimension_semantics<parallel>, #tpu.dimension_semantics<parallel>], iteration_bounds = array<i64: 2, 2>, scalar_prefetch = 0 : i64, scratch_operands = 0 : i64, tpu.core_type = #tpu.core_type<tc>, window_params = [{transform_indices = @transform_0, window_bounds = array<i64: 1, 1, 10, 18, 4>}, {pipeline_mode = #tpu.pipeline_mode<synchronous>, transform_indices = @transform_1, window_bounds = array<i64: 9, 4, 128>}, {transform_indices = @transform_2, window_bounds = array<i64: 1, 8, 16, 128>}, {transform_indices = @transform_3, window_bounds = array<i64: 1, 1, 2, 128>}]} {
    %c0 = arith.constant 0 : index
    %c0_0 = arith.constant 0 : index
    %c0_1 = arith.constant 0 : index
    %c0_2 = arith.constant 0 : index
    %c0_3 = arith.constant 0 : index
    %0 = vector.load %arg2[%c0, %c0_0, %c0_1, %c0_2, %c0_3] : memref<1x1x10x18x4xbf16, #tpu.memory_space<vmem>>, vector<1x1x8x16x4xbf16>
    %1 = vector.shape_cast %0 : vector<1x1x8x16x4xbf16> to vector<8x16x4xbf16>
    %2 = vector.shape_cast %1 : vector<8x16x4xbf16> to vector<128x4xbf16>
    %c0_4 = arith.constant 0 : index
    %c0_5 = arith.constant 0 : index
    %c0_6 = arith.constant 0 : index
    %3 = vector.load %arg3[%c0_4, %c0_5, %c0_6] : memref<9x4x128xbf16, #tpu.memory_space<vmem>>, vector<1x4x128xbf16>
    %4 = vector.shape_cast %3 : vector<1x4x128xbf16> to vector<4x128xbf16>
    %cst = arith.constant dense<0.000000e+00> : vector<128x128xf32>
    %5 = tpu.matmul %2, %4, %cst {dimension_numbers = #tpu.dot_dimension_numbers<[1], [0], [0], [1], [0, 0, 1, 1], [], []>} : vector<128x4xbf16>, vector<4x128xbf16>, vector<128x128xf32> -> vector<128x128xf32>
    %c0_7 = arith.constant 0 : index
    %c0_8 = arith.constant 0 : index
    %c0_9 = arith.constant 0 : index
    %c1 = arith.constant 1 : index
    %c0_10 = arith.constant 0 : index
    %6 = vector.load %arg2[%c0_7, %c0_8, %c0_9, %c1, %c0_10] : memref<1x1x10x18x4xbf16, #tpu.memory_space<vmem>>, vector<1x1x8x16x4xbf16>
    %7 = vector.shape_cast %6 : vector<1x1x8x16x4xbf16> to vector<8x16x4xbf16>
    %8 = vector.shape_cast %7 : vector<8x16x4xbf16> to vector<128x4xbf16>
    %c1_11 = arith.constant 1 : index
    %c0_12 = arith.constant 0 : index
    %c0_13 = arith.constant 0 : index
    %9 = vector.load %arg3[%c1_11, %c0_12, %c0_13] : memref<9x4x128xbf16, #tpu.memory_space<vmem>>, vector<1x4x128xbf16>
    %10 = vector.shape_cast %9 : vector<1x4x128xbf16> to vector<4x128xbf16>
    %cst_14 = arith.constant dense<0.000000e+00> : vector<128x128xf32>
    %11 = tpu.matmul %8, %10, %cst_14 {dimension_numbers = #tpu.dot_dimension_numbers<[1], [0], [0], [1], [0, 0, 1, 1], [], []>} : vector<128x4xbf16>, vector<4x128xbf16>, vector<128x128xf32> -> vector<128x128xf32>
    %12 = arith.addf %5, %11 : vector<128x128xf32>
    %c0_15 = arith.constant 0 : index
    %c0_16 = arith.constant 0 : index
    %c0_17 = arith.constant 0 : index
    %c2 = arith.constant 2 : index
    %c0_18 = arith.constant 0 : index
    %13 = vector.load %arg2[%c0_15, %c0_16, %c0_17, %c2, %c0_18] : memref<1x1x10x18x4xbf16, #tpu.memory_space<vmem>>, vector<1x1x8x16x4xbf16>
    %14 = vector.shape_cast %13 : vector<1x1x8x16x4xbf16> to vector<8x16x4xbf16>
    %15 = vector.shape_cast %14 : vector<8x16x4xbf16> to vector<128x4xbf16>
    %c2_19 = arith.constant 2 : index
    %c0_20 = arith.constant 0 : index
    %c0_21 = arith.constant 0 : index
    %16 = vector.load %arg3[%c2_19, %c0_20, %c0_21] : memref<9x4x128xbf16, #tpu.memory_space<vmem>>, vector<1x4x128xbf16>
    %17 = vector.shape_cast %16 : vector<1x4x128xbf16> to vector<4x128xbf16>
    %cst_22 = arith.constant dense<0.000000e+00> : vector<128x128xf32>
    %18 = tpu.matmul %15, %17, %cst_22 {dimension_numbers = #tpu.dot_dimension_numbers<[1], [0], [0], [1], [0, 0, 1, 1], [], []>} : vector<128x4xbf16>, vector<4x128xbf16>, vector<128x128xf32> -> vector<128x128xf32>
    %19 = arith.addf %12, %18 : vector<128x128xf32>
    %c0_23 = arith.constant 0 : index
    %c0_24 = arith.constant 0 : index
    %c1_25 = arith.constant 1 : index
    %c0_26 = arith.constant 0 : index
    %c0_27 = arith.constant 0 : index
    %20 = vector.load %arg2[%c0_23, %c0_24, %c1_25, %c0_26, %c0_27] : memref<1x1x10x18x4xbf16, #tpu.memory_space<vmem>>, vector<1x1x8x16x4xbf16>
    %21 = vector.shape_cast %20 : vector<1x1x8x16x4xbf16> to vector<8x16x4xbf16>
    %22 = vector.shape_cast %21 : vector<8x16x4xbf16> to vector<128x4xbf16>
    %c3 = arith.constant 3 : index
    %c0_28 = arith.constant 0 : index
    %c0_29 = arith.constant 0 : index
    %23 = vector.load %arg3[%c3, %c0_28, %c0_29] : memref<9x4x128xbf16, #tpu.memory_space<vmem>>, vector<1x4x128xbf16>
    %24 = vector.shape_cast %23 : vector<1x4x128xbf16> to vector<4x128xbf16>
    %cst_30 = arith.constant dense<0.000000e+00> : vector<128x128xf32>
    %25 = tpu.matmul %22, %24, %cst_30 {dimension_numbers = #tpu.dot_dimension_numbers<[1], [0], [0], [1], [0, 0, 1, 1], [], []>} : vector<128x4xbf16>, vector<4x128xbf16>, vector<128x128xf32> -> vector<128x128xf32>
    %26 = arith.addf %19, %25 : vector<128x128xf32>
    %c0_31 = arith.constant 0 : index
    %c0_32 = arith.constant 0 : index
    %c1_33 = arith.constant 1 : index
    %c1_34 = arith.constant 1 : index
    %c0_35 = arith.constant 0 : index
    %27 = vector.load %arg2[%c0_31, %c0_32, %c1_33, %c1_34, %c0_35] : memref<1x1x10x18x4xbf16, #tpu.memory_space<vmem>>, vector<1x1x8x16x4xbf16>
    %28 = vector.shape_cast %27 : vector<1x1x8x16x4xbf16> to vector<8x16x4xbf16>
    %29 = vector.shape_cast %28 : vector<8x16x4xbf16> to vector<128x4xbf16>
    %c4 = arith.constant 4 : index
    %c0_36 = arith.constant 0 : index
    %c0_37 = arith.constant 0 : index
    %30 = vector.load %arg3[%c4, %c0_36, %c0_37] : memref<9x4x128xbf16, #tpu.memory_space<vmem>>, vector<1x4x128xbf16>
    %31 = vector.shape_cast %30 : vector<1x4x128xbf16> to vector<4x128xbf16>
    %cst_38 = arith.constant dense<0.000000e+00> : vector<128x128xf32>
    %32 = tpu.matmul %29, %31, %cst_38 {dimension_numbers = #tpu.dot_dimension_numbers<[1], [0], [0], [1], [0, 0, 1, 1], [], []>} : vector<128x4xbf16>, vector<4x128xbf16>, vector<128x128xf32> -> vector<128x128xf32>
    %33 = arith.addf %26, %32 : vector<128x128xf32>
    %c0_39 = arith.constant 0 : index
    %c0_40 = arith.constant 0 : index
    %c1_41 = arith.constant 1 : index
    %c2_42 = arith.constant 2 : index
    %c0_43 = arith.constant 0 : index
    %34 = vector.load %arg2[%c0_39, %c0_40, %c1_41, %c2_42, %c0_43] : memref<1x1x10x18x4xbf16, #tpu.memory_space<vmem>>, vector<1x1x8x16x4xbf16>
    %35 = vector.shape_cast %34 : vector<1x1x8x16x4xbf16> to vector<8x16x4xbf16>
    %36 = vector.shape_cast %35 : vector<8x16x4xbf16> to vector<128x4xbf16>
    %c5 = arith.constant 5 : index
    %c0_44 = arith.constant 0 : index
    %c0_45 = arith.constant 0 : index
    %37 = vector.load %arg3[%c5, %c0_44, %c0_45] : memref<9x4x128xbf16, #tpu.memory_space<vmem>>, vector<1x4x128xbf16>
    %38 = vector.shape_cast %37 : vector<1x4x128xbf16> to vector<4x128xbf16>
    %cst_46 = arith.constant dense<0.000000e+00> : vector<128x128xf32>
    %39 = tpu.matmul %36, %38, %cst_46 {dimension_numbers = #tpu.dot_dimension_numbers<[1], [0], [0], [1], [0, 0, 1, 1], [], []>} : vector<128x4xbf16>, vector<4x128xbf16>, vector<128x128xf32> -> vector<128x128xf32>
    %40 = arith.addf %33, %39 : vector<128x128xf32>
    %c0_47 = arith.constant 0 : index
    %c0_48 = arith.constant 0 : index
    %c2_49 = arith.constant 2 : index
    %c0_50 = arith.constant 0 : index
    %c0_51 = arith.constant 0 : index
    %41 = vector.load %arg2[%c0_47, %c0_48, %c2_49, %c0_50, %c0_51] : memref<1x1x10x18x4xbf16, #tpu.memory_space<vmem>>, vector<1x1x8x16x4xbf16>
    %42 = vector.shape_cast %41 : vector<1x1x8x16x4xbf16> to vector<8x16x4xbf16>
    %43 = vector.shape_cast %42 : vector<8x16x4xbf16> to vector<128x4xbf16>
    %c6 = arith.constant 6 : index
    %c0_52 = arith.constant 0 : index
    %c0_53 = arith.constant 0 : index
    %44 = vector.load %arg3[%c6, %c0_52, %c0_53] : memref<9x4x128xbf16, #tpu.memory_space<vmem>>, vector<1x4x128xbf16>
    %45 = vector.shape_cast %44 : vector<1x4x128xbf16> to vector<4x128xbf16>
    %cst_54 = arith.constant dense<0.000000e+00> : vector<128x128xf32>
    %46 = tpu.matmul %43, %45, %cst_54 {dimension_numbers = #tpu.dot_dimension_numbers<[1], [0], [0], [1], [0, 0, 1, 1], [], []>} : vector<128x4xbf16>, vector<4x128xbf16>, vector<128x128xf32> -> vector<128x128xf32>
    %47 = arith.addf %40, %46 : vector<128x128xf32>
    %c0_55 = arith.constant 0 : index
    %c0_56 = arith.constant 0 : index
    %c2_57 = arith.constant 2 : index
    %c1_58 = arith.constant 1 : index
    %c0_59 = arith.constant 0 : index
    %48 = vector.load %arg2[%c0_55, %c0_56, %c2_57, %c1_58, %c0_59] : memref<1x1x10x18x4xbf16, #tpu.memory_space<vmem>>, vector<1x1x8x16x4xbf16>
    %49 = vector.shape_cast %48 : vector<1x1x8x16x4xbf16> to vector<8x16x4xbf16>
    %50 = vector.shape_cast %49 : vector<8x16x4xbf16> to vector<128x4xbf16>
    %c7 = arith.constant 7 : index
    %c0_60 = arith.constant 0 : index
    %c0_61 = arith.constant 0 : index
    %51 = vector.load %arg3[%c7, %c0_60, %c0_61] : memref<9x4x128xbf16, #tpu.memory_space<vmem>>, vector<1x4x128xbf16>
    %52 = vector.shape_cast %51 : vector<1x4x128xbf16> to vector<4x128xbf16>
    %cst_62 = arith.constant dense<0.000000e+00> : vector<128x128xf32>
    %53 = tpu.matmul %50, %52, %cst_62 {dimension_numbers = #tpu.dot_dimension_numbers<[1], [0], [0], [1], [0, 0, 1, 1], [], []>} : vector<128x4xbf16>, vector<4x128xbf16>, vector<128x128xf32> -> vector<128x128xf32>
    %54 = arith.addf %47, %53 : vector<128x128xf32>
    %c0_63 = arith.constant 0 : index
    %c0_64 = arith.constant 0 : index
    %c2_65 = arith.constant 2 : index
    %c2_66 = arith.constant 2 : index
    %c0_67 = arith.constant 0 : index
    %55 = vector.load %arg2[%c0_63, %c0_64, %c2_65, %c2_66, %c0_67] : memref<1x1x10x18x4xbf16, #tpu.memory_space<vmem>>, vector<1x1x8x16x4xbf16>
    %56 = vector.shape_cast %55 : vector<1x1x8x16x4xbf16> to vector<8x16x4xbf16>
    %57 = vector.shape_cast %56 : vector<8x16x4xbf16> to vector<128x4xbf16>
    %c8 = arith.constant 8 : index
    %c0_68 = arith.constant 0 : index
    %c0_69 = arith.constant 0 : index
    %58 = vector.load %arg3[%c8, %c0_68, %c0_69] : memref<9x4x128xbf16, #tpu.memory_space<vmem>>, vector<1x4x128xbf16>
    %59 = vector.shape_cast %58 : vector<1x4x128xbf16> to vector<4x128xbf16>
    %cst_70 = arith.constant dense<0.000000e+00> : vector<128x128xf32>
    %60 = tpu.matmul %57, %59, %cst_70 {dimension_numbers = #tpu.dot_dimension_numbers<[1], [0], [0], [1], [0, 0, 1, 1], [], []>} : vector<128x4xbf16>, vector<4x128xbf16>, vector<128x128xf32> -> vector<128x128xf32>
    %61 = arith.addf %54, %60 : vector<128x128xf32>
    %62 = vector.shape_cast %61 : vector<128x128xf32> to vector<8x16x128xf32>
    %63 = arith.truncf %62 : vector<8x16x128xf32> to vector<8x16x128xbf16>
    %c0_71 = arith.constant 0 : index
    %c0_72 = arith.constant 0 : index
    %c0_73 = arith.constant 0 : index
    %c0_74 = arith.constant 0 : index
    %64 = vector.load %arg4[%c0_71, %c0_72, %c0_73, %c0_74] : memref<1x8x16x128xbf16, #tpu.memory_space<vmem>>, vector<1x8x16x128xbf16>
    %65 = vector.shape_cast %64 : vector<1x8x16x128xbf16> to vector<8x16x128xbf16>
    %66 = vector.shape_cast %63 : vector<8x16x128xbf16> to vector<1x8x16x128xbf16>
    tpu.vector_store %arg4[%c0_71, %c0_72, %c0_73, %c0_74], %66 {strides = array<i32>} : memref<1x8x16x128xbf16, #tpu.memory_space<vmem>>, vector<1x8x16x128xbf16>,
    %cst_75 = arith.constant dense<0.000000e+00> : vector<128xf32>
    %67 = vector.multi_reduction <add>, %61, %cst_75 [0] : vector<128x128xf32> to vector<128xf32>
    %68 = vector.shape_cast %67 : vector<128xf32> to vector<1x128xf32>
    %c0_76 = arith.constant 0 : index
    %c0_77 = arith.constant 0 : index
    %c0_78 = arith.constant 0 : index
    %c0_79 = arith.constant 0 : index
    %69 = vector.load %arg5[%c0_76, %c0_77, %c0_78, %c0_79] : memref<1x1x2x128xf32, #tpu.memory_space<vmem>>, vector<1x1x1x128xf32>
    %70 = vector.shape_cast %69 : vector<1x1x1x128xf32> to vector<1x128xf32>
    %71 = vector.shape_cast %68 : vector<1x128xf32> to vector<1x1x1x128xf32>
    tpu.vector_store %arg5[%c0_76, %c0_77, %c0_78, %c0_79], %71 {strides = array<i32>} : memref<1x1x2x128xf32, #tpu.memory_space<vmem>>, vector<1x1x1x128xf32>,
    %72 = arith.mulf %61, %61 : vector<128x128xf32>
    %cst_80 = arith.constant dense<0.000000e+00> : vector<128xf32>
    %73 = vector.multi_reduction <add>, %72, %cst_80 [0] : vector<128x128xf32> to vector<128xf32>
    %74 = vector.shape_cast %73 : vector<128xf32> to vector<1x128xf32>
    %c0_81 = arith.constant 0 : index
    %c0_82 = arith.constant 0 : index
    %c1_83 = arith.constant 1 : index
    %c0_84 = arith.constant 0 : index
    %75 = vector.load %arg5[%c0_81, %c0_82, %c1_83, %c0_84] : memref<1x1x2x128xf32, #tpu.memory_space<vmem>>, vector<1x1x1x128xf32>
    %76 = vector.shape_cast %75 : vector<1x1x1x128xf32> to vector<1x128xf32>
    %77 = vector.shape_cast %74 : vector<1x128xf32> to vector<1x1x1x128xf32>
    tpu.vector_store %arg5[%c0_81, %c0_82, %c1_83, %c0_84], %77 {strides = array<i32>} : memref<1x1x2x128xf32, #tpu.memory_space<vmem>>, vector<1x1x1x128xf32>,
    return
  }
  func.func @transform_0(%arg0: i32, %arg1: i32) -> (i32, i32, i32, i32, i32) {
    %c0_i32 = arith.constant 0 : i32
    %c0_i32_0 = arith.constant 0 : i32
    %c0_i32_1 = arith.constant 0 : i32
    %c0_i32_2 = arith.constant 0 : i32
    return %arg0, %arg1, %c0_i32, %c0_i32_0, %c0_i32_1 : i32, i32, i32, i32, i32
  }
  func.func @transform_1(%arg0: i32, %arg1: i32) -> (i32, i32, i32) {
    %c0_i32 = arith.constant 0 : i32
    %c0_i32_0 = arith.constant 0 : i32
    %c0_i32_1 = arith.constant 0 : i32
    %c0_i32_2 = arith.constant 0 : i32
    return %c0_i32, %c0_i32_0, %c0_i32_1 : i32, i32, i32
  }
  func.func @transform_2(%arg0: i32, %arg1: i32) -> (i32, i32, i32, i32) {
    %c0_i32 = arith.constant 0 : i32
    %c0_i32_0 = arith.constant 0 : i32
    %c0_i32_1 = arith.constant 0 : i32
    return %arg0, %arg1, %c0_i32, %c0_i32_0 : i32, i32, i32, i32
  }
  func.func @transform_3(%arg0: i32, %arg1: i32) -> (i32, i32, i32, i32) {
    %c0_i32 = arith.constant 0 : i32
    %c0_i32_0 = arith.constant 0 : i32
    %c0_i32_1 = arith.constant 0 : i32
    return %arg0, %arg1, %c0_i32, %c0_i32_0 : i32, i32, i32, i32
  }
}

</mosaic_0001>

<llo_original>
// kernel: tpu_custom_call.1
$region0: #{tpu_custom_call.1}
  #allocation0 [shape = 'u32[]', space=smem, size = 0x4, offset = 0x4, fixed_abs, tag = 'smem constant byte address 0x4 - core index']
  #allocation1 [shape = 'u32[144,128]{1,0:T(1,128)}', space=vmem, size = 0x12000, scoped, tag = 'internal scratch']
  %s0 = inlined_call_operand.vmem [shape: bf16[2,2,10,18,4], index: 0, kind: input, shape index: {}]
  %s1 = inlined_call_operand.vmem [shape: bf16[9,4,128], index: 1, kind: input, shape index: {}]
  %s2 = inlined_call_operand.hbm [shape: bf16[2,16,16,128], index: 2, kind: output, shape index: {0}]
  %s3 = inlined_call_operand.hbm [shape: f32[2,2,2,128], index: 3, kind: output, shape index: {1}]
  %4 = xla_tuple %s2, %s3
  %s5 = sld [smem:[#allocation0]]
  $region49: #{tpu_custom_call.1} parent=0
    _
  %s7 = ssub.s32 1, %s5
  %s8 = scalar_select 0, %s7, %s5
  $region1: #{tpu_custom_call.1} parent=0
    #allocation2 [shape = 'u8[65536]{0}', space=vmem, size = 0x10000, scoped, tag = 'output window, operand 0']
    #allocation3 [shape = 's32[2]{0}', space=sflag, size = 0x8, scoped, tag = 'scoped memory for tpu_custom_call.1']
    #allocation4 [shape = 'u8[2048]{0}', space=vmem, size = 0x800, scoped, tag = 'output window, operand 1']
    #allocation5 [shape = 's32[2]{0}', space=sflag, size = 0x8, scoped, tag = 'scoped memory for tpu_custom_call.1']
    %9 = vsyncpa [#allocation3], 0
    %s10 = scalar_lea.sflag [#allocation3], 1
    %11 = vsyncpa %s10, 0
    %12 = vsyncpa [#allocation5], 0
    %s13 = scalar_lea.sflag [#allocation5], 1
    %14 = vsyncpa %s13, 0
    loop: start=0, step=1, limit=6
    $region2: #{tpu_custom_call.1} parent=1 // loop_pre_header
      _
    $region3: #{tpu_custom_call.1} parent=1 // loop_header
      %s16 = sphi 0, %s20
      %p17 = scmp.ge.s32.totalorder %s16, 6
      %s23 = sphi 0, %s35
      %s24 = sphi 0, %s31
      %s25 = sphi 0, %s23
      %s26 = sphi 0, %s24
      %s27 = sphi 0, %s25
      %s28 = sphi 0, %s26
      %s40 = sphi 0, %s42
      %s43 = sphi 0, %s40
      %s44 = sphi 0, %s43
      %s60 = sphi 0, %s44
      %s64 = sphi 0, %s64
      %s66 = sphi 0, %s64
      %s67 = sphi 0, %s66
      %s81 = sphi 0, %s67
      %s89 = sphi 0, %s91
      %s92 = sphi 0, %s89
      %s93 = sphi 0, %s92
      %s109 = sphi 0, %s93
      %s117 = sphi 0, %s119
      %s120 = sphi 0, %s117
      %s121 = sphi 0, %s120
      %s137 = sphi 0, %s121
    $region4: #{tpu_custom_call.1} parent=1 // loop_header_branch
      %19 = sbr.rel (%p17) target = $region8
    $region5: #{tpu_custom_call.1} parent=1 // loop_body
      %s21 = ssub.s32 %s16, 1
      %s22 = ssub.s32 %s16, 2
      %s29 = sadd.s32 1, %s24
      %p30 = scmp.ge.s32.totalorder %s29, 2
      %s31 = scalar_select %p30, 0, %s29
      %s32 = sadd.s32 1, %s23
      %s33 = scalar_select %p30, %s32, %s23
      %p34 = scmp.ge.s32.totalorder %s33, 2
      %s35 = scalar_select %p34, 0, %s33
      %s36 = ssub.s32 %s23, %s35
      %s37 = ssub.s32 %s24, %s31
      %s38 = sor.u32 %s36, %s37
      %p39 = scmp.eq.s32.totalorder %s38, 0
      %s41 = sadd.s32 %s40, 1
      %s42 = scalar_select %p39, %s40, %s41
      %p45 = pneg %p39
      %p46 = scmp.eq.s32.totalorder %s16, 3
      %p47 = por %p45, %p46
      %p48 = scmp.ne.s32.totalorder %s40, %s43
      %p49 = scmp.eq.s32.totalorder %s16, 0
      %p50 = por %p48, %p49
      %p51 = scmp.ne.s32.totalorder %s40, %s43
      %p52 = scmp.eq.s32.totalorder %s21, 3
      %p53 = por %p51, %p52
      %p54 = scmp.ne.s32.totalorder %s43, %s44
      %p55 = scmp.eq.s32.totalorder %s21, 0
      %p56 = por %p54, %p55
      %p57 = scmp.ne.s32.totalorder %s43, %s44
      %p58 = scmp.eq.s32.totalorder %s22, 3
      %p59 = por %p57, %p58
      %p61 = scmp.ne.s32.totalorder %s44, %s60
      %p62 = scmp.eq.s32.totalorder %s22, 0
      %p63 = por %p61, %p62
      %s65 = sadd.s32 %s64, 1
      %p68 = scmp.eq.s32.totalorder %s16, 3
      %p69 = scmp.ne.s32.totalorder %s64, %s66
      %p70 = scmp.eq.s32.totalorder %s16, 0
      %p71 = por %p69, %p70
      %p72 = scmp.ne.s32.totalorder %s64, %s66
      %p73 = scmp.eq.s32.totalorder %s21, 3
      %p74 = por %p72, %p73
      %p75 = scmp.ne.s32.totalorder %s66, %s67
      %p76 = scmp.eq.s32.totalorder %s21, 0
      %p77 = por %p75, %p76
      %p78 = scmp.ne.s32.totalorder %s66, %s67
      %p79 = scmp.eq.s32.totalorder %s22, 3
      %p80 = por %p78, %p79
      %p82 = scmp.ne.s32.totalorder %s67, %s81
      %p83 = scmp.eq.s32.totalorder %s22, 0
      %p84 = por %p82, %p83
      %s85 = ssub.s32 %s23, %s35
      %s86 = ssub.s32 %s24, %s31
      %s87 = sor.u32 %s85, %s86
      %p88 = scmp.eq.s32.totalorder %s87, 0
      %s90 = sadd.s32 %s89, 1
      %s91 = scalar_select %p88, %s89, %s90
      %p94 = pneg %p88
      %p95 = scmp.eq.s32.totalorder %s16, 3
      %p96 = por %p94, %p95
      %p97 = scmp.ne.s32.totalorder %s89, %s92
      %p98 = scmp.eq.s32.totalorder %s16, 0
      %p99 = por %p97, %p98
      %p100 = scmp.ne.s32.totalorder %s89, %s92
      %p101 = scmp.eq.s32.totalorder %s21, 3
      %p102 = por %p100, %p101
      %p103 = scmp.ne.s32.totalorder %s92, %s93
      %p104 = scmp.eq.s32.totalorder %s21, 0
      %p105 = por %p103, %p104
      %p106 = scmp.ne.s32.totalorder %s92, %s93
      %p107 = scmp.eq.s32.totalorder %s22, 3
      %p108 = por %p106, %p107
      %p110 = scmp.ne.s32.totalorder %s93, %s109
      %p111 = scmp.eq.s32.totalorder %s22, 0
      %p112 = por %p110, %p111
      %s113 = ssub.s32 %s23, %s35
      %s114 = ssub.s32 %s24, %s31
      %s115 = sor.u32 %s113, %s114
      %p116 = scmp.eq.s32.totalorder %s115, 0
      %s118 = sadd.s32 %s117, 1
      %s119 = scalar_select %p116, %s117, %s118
      %p122 = pneg %p116
      %p123 = scmp.eq.s32.totalorder %s16, 3
      %p124 = por %p122, %p123
      %p125 = scmp.ne.s32.totalorder %s117, %s120
      %p126 = scmp.eq.s32.totalorder %s16, 0
      %p127 = por %p125, %p126
      %p128 = scmp.ne.s32.totalorder %s117, %s120
      %p129 = scmp.eq.s32.totalorder %s21, 3
      %p130 = por %p128, %p129
      %p131 = scmp.ne.s32.totalorder %s120, %s121
      %p132 = scmp.eq.s32.totalorder %s21, 0
      %p133 = por %p131, %p132
      %p134 = scmp.ne.s32.totalorder %s120, %s121
      %p135 = scmp.eq.s32.totalorder %s22, 3
      %p136 = por %p134, %p135
      %p138 = scmp.ne.s32.totalorder %s121, %s137
      %p139 = scmp.eq.s32.totalorder %s22, 0
      %p140 = por %p138, %p139
      %p141 = scmp.le.s32.totalorder 1, %s16
      %p142 = scmp.lt.s32.totalorder %s16, 5
      %p143 = pnand %p141, %p142
      %p144 = pneg %p143
      // Predicated region
      $region9: #{tpu_custom_call.1} parent=5 // pred_check
        _
      $region10: #{tpu_custom_call.1} parent=5 // pred_check_branch
        %146 = sbr.rel (%p143) target = $region12
      $region11: #{tpu_custom_call.1} parent=5 // pred_region
        %s147 = ssub.s32 %s16, 1
        // Predicated region
        $region13: #{tpu_custom_call.1} parent=11 // pred_check
          %p148 = pneg %p77
        $region14: #{tpu_custom_call.1} parent=11 // pred_check_branch
          %150 = sbr.rel (%p148) target = $region16
        $region15: #{tpu_custom_call.1} parent=11 // pred_region
          _
        $region16: #{tpu_custom_call.1} parent=11 // pred_fallthru
          _
      $region12: #{tpu_custom_call.1} parent=5 // pred_fallthru
        _
      %p151 = scmp.lt.s32.totalorder %s16, 4
      // Predicated region
      $region17: #{tpu_custom_call.1} parent=5 // pred_check
        %p152 = pneg %p151
      $region18: #{tpu_custom_call.1} parent=5 // pred_check_branch
        %154 = sbr.rel (%p152) target = $region20
      $region19: #{tpu_custom_call.1} parent=5 // pred_region
        // Predicated region
        $region21: #{tpu_custom_call.1} parent=19 // pred_check
          %p155 = pneg %p50
        $region22: #{tpu_custom_call.1} parent=19 // pred_check_branch
          %157 = sbr.rel (%p155) target = $region24
        $region23: #{tpu_custom_call.1} parent=19 // pred_region
          %p158 = scmp.lt.s32.totalorder %s23, 1
          %s159 = scalar_select %p158, %s23, 1
          %p160 = scmp.lt.s32.totalorder %s24, 1
          %s161 = scalar_select %p160, %s24, 1
          %s162 = smul.addr %s161, 30
          %s163 = smul.addr %s159, 60
          %s164 = sadd.s32 %s162, %s163
          %s165 = smul.addr %s164, 4
          %s166 = scalar_lea.vmem %s0, %s165
        $region24: #{tpu_custom_call.1} parent=19 // pred_fallthru
          _
      $region20: #{tpu_custom_call.1} parent=5 // pred_fallthru
        _
      %p167 = scmp.le.s32.totalorder 1, %s16
      %p168 = scmp.lt.s32.totalorder %s16, 5
      %p169 = pnand %p167, %p168
      %p170 = pneg %p169
      // Predicated region
      $region25: #{tpu_custom_call.1} parent=5 // pred_check
        _
      $region26: #{tpu_custom_call.1} parent=5 // pred_check_branch
        %172 = sbr.rel (%p169) target = $region28
      $region27: #{tpu_custom_call.1} parent=5 // pred_region
        %s173 = ssub.s32 %s16, 1
        %p174 = scmp.lt.s32.totalorder %s25, 1
        %s175 = scalar_select %p174, %s25, 1
        %p176 = scmp.lt.s32.totalorder %s26, 1
        %s177 = scalar_select %p176, %s26, 1
        %s178 = smul.addr %s177, 30
        %s179 = smul.addr %s175, 60
        %s180 = sadd.s32 %s178, %s179
        %s181 = smul.addr %s180, 4
        %s182 = scalar_lea.vmem %s0, %s181
        %p183 = pneg %p56
        %p184 = pneg %p53
        %p185 = pneg %p77
        %p186 = pneg %p74
        %p187 = pneg %p105
        %p188 = pneg %p102
        %s189 = sand.u32 %s92, 1
        %s190 = scalar_lea.sflag [#allocation3], %s189
        %s191 = sand.u32 %s92, 1
        %s192 = smul.addr %s191, 64
        %s193 = scalar_lea.vmem [#allocation2], %s192
        %p194 = pneg %p133
        %p195 = pneg %p130
        %s196 = sand.u32 %s120, 1
        %s197 = scalar_lea.sflag [#allocation5], %s196
        %s198 = sand.u32 %s120, 1
        %s199 = smul.addr %s198, 2
        %s200 = scalar_lea.vmem [#allocation4], %s199
        %p201 = scmp.lt.s32.totalorder %s25, 1
        %s202 = scalar_select %p201, %s25, 1
        %p203 = scmp.lt.s32.totalorder %s26, 1
        %s204 = scalar_select %p203, %s26, 1
        %s205 = smul.addr %s204, 30
        %s206 = smul.addr %s202, 60
        %s207 = sadd.s32 %s205, %s206
        %s208 = smul.addr %s207, 4
        %s209 = scalar_lea.vmem %s0, %s208
        %s210 = smul.u32 8, %s26
        %v212 = vld [vmem:[%s209] sm:$0xf]
        %v213 = vld [vmem:[%s209 + $0x4] sm:$0xf]
        %v214 = vld [vmem:[%s209 + $0xc] sm:$0xf]
        %v215 = vld [vmem:[%s209 + $0x10] sm:$0xf]
        %v216 = vld [vmem:[%s209 + $0x18] sm:$0xf]
        %v217 = vld [vmem:[%s209 + $0x1c] sm:$0xf]
        %v218 = vld [vmem:[%s209 + $0x24] sm:$0xf]
        %v219 = vld [vmem:[%s209 + $0x28] sm:$0xf]
        %v220 = vld [vmem:[%s209 + $0x30] sm:$0xf]
        %v221 = vld [vmem:[%s209 + $0x34] sm:$0xf]
        %v222 = vld [vmem:[%s209 + $0x3c] sm:$0xf]
        %v223 = vld [vmem:[%s209 + $0x40] sm:$0xf]
        %v224 = vld [vmem:[%s209 + $0x48] sm:$0xf]
        %v225 = vld [vmem:[%s209 + $0x4c] sm:$0xf]
        %v226 = vld [vmem:[%s209 + $0x54] sm:$0xf]
        %v227 = vld [vmem:[%s209 + $0x58] sm:$0xf]
        %v228 = vld [vmem:[%s1] sm:$0x3]
        %v229 = vld [vmem:[%s209 + $0x8] sm:$0x1]
        %v230 = vld [vmem:[%s209 + $0x14] sm:$0x1]
        %v231 = vld [vmem:[%s209 + $0x20] sm:$0x1]
        %v232 = vld [vmem:[%s209 + $0x2c] sm:$0x1]
        %v233 = vld [vmem:[%s209 + $0x38] sm:$0x1]
        %v234 = vld [vmem:[%s209 + $0x44] sm:$0x1]
        %v235 = vld [vmem:[%s209 + $0x50] sm:$0x1]
        %v236 = vld [vmem:[%s209 + $0x5c] sm:$0x1]
        %vm237 = vsmask.f32 3328
        %vm238 = vsmask.f32 7440
        %vm239 = vmor %vm237, %vm238
        %v241 = vshrl.u32 %v212, 16
        %v243 = vrot.slane %v241, 4
        %v244 = vshll.u32 %v212, 16
        %v246 = vrot.slane %v244, 5
        %v247 = vor.u32 %v243, %v246
        %v248 = vrot.slane %v247, 4
        %v250 = vshll.u32 %v213, 16
        %v252 = vrot.slane %v250, 5
        %v253 = vsel %vm239, %v248, %v252
        %v254 = vshrl.u32 %v213, 16
        %v256 = vrot.slane %v254, 4
        %v257 = vor.u32 %v256, %v252
        %v258 = vrot.slane %v257, 4
        %v260 = vshll.u32 %v229, 16
        %v262 = vrot.slane %v260, 5
        %v263 = vsel %vm239, %v258, %v262
        %v265 = vshrl.u32 %v214, 16
        %v267 = vrot.slane %v265, 4
        %v268 = vshll.u32 %v214, 16
        %v270 = vrot.slane %v268, 5
        %v271 = vor.u32 %v267, %v270
        %v272 = vrot.slane %v271, 4
        %v274 = vshll.u32 %v215, 16
        %v276 = vrot.slane %v274, 5
        %v277 = vsel %vm239, %v272, %v276
        %v278 = vshrl.u32 %v215, 16
        %v280 = vrot.slane %v278, 4
        %v281 = vor.u32 %v280, %v276
        %v282 = vrot.slane %v281, 4
        %v284 = vshll.u32 %v230, 16
        %v286 = vrot.slane %v284, 5
        %v287 = vsel %vm239, %v282, %v286
        %v289 = vshrl.u32 %v216, 16
        %v291 = vrot.slane %v289, 4
        %v292 = vshll.u32 %v216, 16
        %v294 = vrot.slane %v292, 5
        %v295 = vor.u32 %v291, %v294
        %v296 = vrot.slane %v295, 4
        %v298 = vshll.u32 %v217, 16
        %v300 = vrot.slane %v298, 5
        %v301 = vsel %vm239, %v296, %v300
        %v302 = vshrl.u32 %v217, 16
        %v304 = vrot.slane %v302, 4
        %v305 = vor.u32 %v304, %v300
        %v306 = vrot.slane %v305, 4
        %v308 = vshll.u32 %v231, 16
        %v310 = vrot.slane %v308, 5
        %v311 = vsel %vm239, %v306, %v310
        %v313 = vshrl.u32 %v218, 16
        %v315 = vrot.slane %v313, 4
        %v316 = vshll.u32 %v218, 16
        %v318 = vrot.slane %v316, 5
        %v319 = vor.u32 %v315, %v318
        %v320 = vrot.slane %v319, 4
        %v322 = vshll.u32 %v219, 16
        %v324 = vrot.slane %v322, 5
        %v325 = vsel %vm239, %v320, %v324
        %v326 = vshrl.u32 %v219, 16
        %v328 = vrot.slane %v326, 4
        %v329 = vor.u32 %v328, %v324
        %v330 = vrot.slane %v329, 4
        %v332 = vshll.u32 %v232, 16
        %v334 = vrot.slane %v332, 5
        %v335 = vsel %vm239, %v330, %v334
        %v337 = vshrl.u32 %v220, 16
        %v339 = vrot.slane %v337, 4
        %v340 = vshll.u32 %v220, 16
        %v342 = vrot.slane %v340, 5
        %v343 = vor.u32 %v339, %v342
        %v344 = vrot.slane %v343, 4
        %v346 = vshll.u32 %v221, 16
        %v348 = vrot.slane %v346, 5
        %v349 = vsel %vm239, %v344, %v348
        %v350 = vshrl.u32 %v221, 16
        %v352 = vrot.slane %v350, 4
        %v353 = vor.u32 %v352, %v348
        %v354 = vrot.slane %v353, 4
        %v356 = vshll.u32 %v233, 16
        %v358 = vrot.slane %v356, 5
        %v359 = vsel %vm239, %v354, %v358
        %v361 = vshrl.u32 %v222, 16
        %v363 = vrot.slane %v361, 4
        %v364 = vshll.u32 %v222, 16
        %v366 = vrot.slane %v364, 5
        %v367 = vor.u32 %v363, %v366
        %v368 = vrot.slane %v367, 4
        %v370 = vshll.u32 %v223, 16
        %v372 = vrot.slane %v370, 5
        %v373 = vsel %vm239, %v368, %v372
        %v374 = vshrl.u32 %v223, 16
        %v376 = vrot.slane %v374, 4
        %v377 = vor.u32 %v376, %v372
        %v378 = vrot.slane %v377, 4
        %v380 = vshll.u32 %v234, 16
        %v382 = vrot.slane %v380, 5
        %v383 = vsel %vm239, %v378, %v382
        %v385 = vshrl.u32 %v224, 16
        %v387 = vrot.slane %v385, 4
        %v388 = vshll.u32 %v224, 16
        %v390 = vrot.slane %v388, 5
        %v391 = vor.u32 %v387, %v390
        %v392 = vrot.slane %v391, 4
        %v394 = vshll.u32 %v225, 16
        %v396 = vrot.slane %v394, 5
        %v397 = vsel %vm239, %v392, %v396
        %v398 = vshrl.u32 %v225, 16
        %v400 = vrot.slane %v398, 4
        %v401 = vor.u32 %v400, %v396
        %v402 = vrot.slane %v401, 4
        %v404 = vshll.u32 %v235, 16
        %v406 = vrot.slane %v404, 5
        %v407 = vsel %vm239, %v402, %v406
        %v409 = vshrl.u32 %v226, 16
        %v411 = vrot.slane %v409, 4
        %v412 = vshll.u32 %v226, 16
        %v414 = vrot.slane %v412, 5
        %v415 = vor.u32 %v411, %v414
        %v416 = vrot.slane %v415, 4
        %v418 = vshll.u32 %v227, 16
        %v420 = vrot.slane %v418, 5
        %v421 = vsel %vm239, %v416, %v420
        %v422 = vshrl.u32 %v227, 16
        %v424 = vrot.slane %v422, 4
        %v425 = vor.u32 %v424, %v420
        %v426 = vrot.slane %v425, 4
        %v428 = vshll.u32 %v236, 16
        %v430 = vrot.slane %v428, 5
        %v431 = vsel %vm239, %v426, %v430
        %s432 = scalar_lea.vmem %s1, 2
        %v433 = vld [vmem:[%s432] sm:$0x3]
        %v434 = vunpack.c.l.b16 %v253
        %v435 = vunpack.c.l.b16 %v263
        %v436 = vunpack.c.l.b16 %v277
        %v437 = vunpack.c.l.b16 %v287
        %v438 = vunpack.c.l.b16 %v301
        %v439 = vunpack.c.l.b16 %v311
        %v440 = vunpack.c.l.b16 %v325
        %v441 = vunpack.c.l.b16 %v335
        %v442 = vunpack.c.l.b16 %v349
        %v443 = vunpack.c.l.b16 %v359
        %v444 = vunpack.c.l.b16 %v373
        %v445 = vunpack.c.l.b16 %v383
        %v446 = vunpack.c.l.b16 %v397
        %v447 = vunpack.c.l.b16 %v407
        %v448 = vunpack.c.l.b16 %v421
        %v449 = vunpack.c.l.b16 %v431
        %v450 = vpack.c.b16 %v435, %v434
        %v451 = vpack.c.b16 %v437, %v436
        %v452 = vpack.c.b16 %v439, %v438
        %v453 = vpack.c.b16 %v441, %v440
        %v454 = vpack.c.b16 %v443, %v442
        %v455 = vpack.c.b16 %v445, %v444
        %v456 = vpack.c.b16 %v447, %v446
        %v457 = vpack.c.b16 %v449, %v448
        %vm458 = vcmask 31744
        %v460 = vsel %vm458, %v450, 0
        %v463 = vsel %vm458, %v451, 0
        %v466 = vsel %vm458, %v452, 0
        %v469 = vsel %vm458, %v453, 0
        %v472 = vsel %vm458, %v454, 0
        %v475 = vsel %vm458, %v455, 0
        %v478 = vsel %vm458, %v456, 0
        %v481 = vsel %vm458, %v457, 0
        %vm483 = vcmask 1041408
        %v485 = vsel %vm483, %v433, 0
        %487 = vmatprep.subr.bf16.mxu0 0
        %488 = vmatpush1.bf16.msra.mxu0 %v485
        %489 = vmatprep.subr.bf16.mxu0 0
        %490 = vmatpush1.bf16.msra.mxu0 0
        %491 = vmatprep.subr.bf16.mxu0 0
        %492 = vmatpush1.bf16.msra.mxu0 0
        %493 = vmatprep.subr.bf16.mxu0 0
        %494 = vmatpush1.bf16.msra.mxu0 0
        %495 = vmatprep.subr.bf16.mxu0 0
        %496 = vmatpush1.bf16.msra.mxu0 0
        %497 = vmatprep.subr.bf16.mxu0 0
        %498 = vmatpush1.bf16.msra.mxu0 0
        %499 = vmatprep.subr.bf16.mxu0 0
        %500 = vmatpush1.bf16.msra.mxu0 0
        %501 = vmatprep.subr.bf16.mxu0 0
        %502 = vmatpush1.bf16.msra.mxu0 0
        %503 = vmatprep.subr.bf16.mxu0 0
        %504 = vmatpush1.bf16.msra.mxu0 0
        %505 = vmatprep.subr.bf16.mxu0 0
        %506 = vmatpush1.bf16.msra.mxu0 0
        %507 = vmatprep.subr.bf16.mxu0 0
        %508 = vmatpush1.bf16.msra.mxu0 0
        %509 = vmatprep.subr.bf16.mxu0 0
        %510 = vmatpush1.bf16.msra.mxu0 0
        %511 = vmatprep.subr.bf16.mxu0 0
        %512 = vmatpush1.bf16.msra.mxu0 0
        %513 = vmatprep.subr.bf16.mxu0 0
        %514 = vmatpush1.bf16.msra.mxu0 0
        %515 = vmatprep.subr.bf16.mxu0 0
        %516 = vmatpush1.bf16.msra.mxu0 0
        %517 = vmatprep.subr.bf16.mxu0 0
        %518 = vmatpush1.bf16.msra.mxu0 0
        %519 = vmatprep.mubr.bf16.mxu0 0
        %520 = vmatmul.mubr.bf16.gmra.mrb[0].mxu0 %v460
        %v521 = vpop.f32.mrb[0].mxu0
        %v522 = vadd.f32 0.0, %v521
        %v523 = vpop.f32.mrb[0].mxu0
        %v524 = vpop.f32.mrb[0].mxu0
        %v525 = vadd.f32 0.0, %v524
        %v526 = vpop.f32.mrb[0].mxu0
        %527 = vmatprep.mubr.bf16.mxu0 0
        %528 = vmatmul.mubr.bf16.gmra.mrb[0].mxu0 %v463
        %v529 = vpop.f32.mrb[0].mxu0
        %v530 = vadd.f32 0.0, %v529
        %v531 = vpop.f32.mrb[0].mxu0
        %v532 = vpop.f32.mrb[0].mxu0
        %v533 = vadd.f32 0.0, %v532
        %v534 = vpop.f32.mrb[0].mxu0
        %535 = vmatprep.mubr.bf16.mxu0 0
        %536 = vmatmul.mubr.bf16.gmra.mrb[0].mxu0 %v466
        %v537 = vpop.f32.mrb[0].mxu0
        %v538 = vadd.f32 0.0, %v537
        %v539 = vpop.f32.mrb[0].mxu0
        %v540 = vpop.f32.mrb[0].mxu0
        %v541 = vadd.f32 0.0, %v540
        %v542 = vpop.f32.mrb[0].mxu0
        %543 = vmatprep.mubr.bf16.mxu0 0
        %544 = vmatmul.mubr.bf16.gmra.mrb[0].mxu0 %v469
        %v545 = vpop.f32.mrb[0].mxu0
        %v546 = vadd.f32 0.0, %v545
        %v547 = vpop.f32.mrb[0].mxu0
        %v548 = vpop.f32.mrb[0].mxu0
        %v549 = vadd.f32 0.0, %v548
        %v550 = vpop.f32.mrb[0].mxu0
        %551 = vmatprep.mubr.bf16.mxu0 0
        %552 = vmatmul.mubr.bf16.gmra.mrb[0].mxu0 %v472
        %v553 = vpop.f32.mrb[0].mxu0
        %v554 = vadd.f32 0.0, %v553
        %v555 = vpop.f32.mrb[0].mxu0
        %v556 = vpop.f32.mrb[0].mxu0
        %v557 = vadd.f32 0.0, %v556
        %v558 = vpop.f32.mrb[0].mxu0
        %559 = vmatprep.mubr.bf16.mxu0 0
        %560 = vmatmul.mubr.bf16.gmra.mrb[0].mxu0 %v475
        %v561 = vpop.f32.mrb[0].mxu0
        %v562 = vadd.f32 0.0, %v561
        %v563 = vpop.f32.mrb[0].mxu0
        %v564 = vpop.f32.mrb[0].mxu0
        %v565 = vadd.f32 0.0, %v564
        %v566 = vpop.f32.mrb[0].mxu0
        %567 = vmatprep.mubr.bf16.mxu0 0
        %568 = vmatmul.mubr.bf16.gmra.mrb[0].mxu0 %v478
        %v569 = vpop.f32.mrb[0].mxu0
        %v570 = vadd.f32 0.0, %v569
        %v571 = vpop.f32.mrb[0].mxu0
        %v572 = vpop.f32.mrb[0].mxu0
        %v573 = vadd.f32 0.0, %v572
        %v574 = vpop.f32.mrb[0].mxu0
        %575 = vmatprep.mubr.bf16.mxu0 0
        %576 = vmatmul.mubr.bf16.gmra.mrb[0].mxu0 %v481
        %v577 = vpop.f32.mrb[0].mxu0
        %v578 = vadd.f32 0.0, %v577
        %v579 = vpop.f32.mrb[0].mxu0
        %v580 = vpop.f32.mrb[0].mxu0
        %v581 = vadd.f32 0.0, %v580
        %v582 = vpop.f32.mrb[0].mxu0
        %583 = vdwg.mxu0
        %v600 = vunpack.c.l.b16 %v212
        %v601 = vunpack.c.l.b16 %v213
        %v602 = vunpack.c.l.b16 %v214
        %v603 = vunpack.c.l.b16 %v215
        %v604 = vunpack.c.l.b16 %v216
        %v605 = vunpack.c.l.b16 %v217
        %v606 = vunpack.c.l.b16 %v218
        %v607 = vunpack.c.l.b16 %v219
        %v608 = vunpack.c.l.b16 %v220
        %v609 = vunpack.c.l.b16 %v221
        %v610 = vunpack.c.l.b16 %v222
        %v611 = vunpack.c.l.b16 %v223
        %v612 = vunpack.c.l.b16 %v224
        %v613 = vunpack.c.l.b16 %v225
        %v614 = vunpack.c.l.b16 %v226
        %v615 = vunpack.c.l.b16 %v227
        %v616 = vpack.c.b16 %v601, %v600
        %v617 = vpack.c.b16 %v603, %v602
        %v618 = vpack.c.b16 %v605, %v604
        %v619 = vpack.c.b16 %v607, %v606
        %v620 = vpack.c.b16 %v609, %v608
        %v621 = vpack.c.b16 %v611, %v610
        %v622 = vpack.c.b16 %v613, %v612
        %v623 = vpack.c.b16 %v615, %v614
        %v625 = vsel %vm458, %v616, 0
        %v628 = vsel %vm458, %v617, 0
        %v631 = vsel %vm458, %v618, 0
        %v634 = vsel %vm458, %v619, 0
        %v637 = vsel %vm458, %v620, 0
        %v640 = vsel %vm458, %v621, 0
        %v643 = vsel %vm458, %v622, 0
        %v646 = vsel %vm458, %v623, 0
        %v649 = vsel %vm483, %v228, 0
        %651 = vmatprep.subr.bf16.mxu0 0
        %652 = vmatpush1.bf16.msra.mxu0 %v649
        %653 = vmatprep.subr.bf16.mxu0 0
        %654 = vmatpush1.bf16.msra.mxu0 0
        %655 = vmatprep.subr.bf16.mxu0 0
        %656 = vmatpush1.bf16.msra.mxu0 0
        %657 = vmatprep.subr.bf16.mxu0 0
        %658 = vmatpush1.bf16.msra.mxu0 0
        %659 = vmatprep.subr.bf16.mxu0 0
        %660 = vmatpush1.bf16.msra.mxu0 0
        %661 = vmatprep.subr.bf16.mxu0 0
        %662 = vmatpush1.bf16.msra.mxu0 0
        %663 = vmatprep.subr.bf16.mxu0 0
        %664 = vmatpush1.bf16.msra.mxu0 0
        %665 = vmatprep.subr.bf16.mxu0 0
        %666 = vmatpush1.bf16.msra.mxu0 0
        %667 = vmatprep.subr.bf16.mxu0 0
        %668 = vmatpush1.bf16.msra.mxu0 0
        %669 = vmatprep.subr.bf16.mxu0 0
        %670 = vmatpush1.bf16.msra.mxu0 0
        %671 = vmatprep.subr.bf16.mxu0 0
        %672 = vmatpush1.bf16.msra.mxu0 0
        %673 = vmatprep.subr.bf16.mxu0 0
        %674 = vmatpush1.bf16.msra.mxu0 0
        %675 = vmatprep.subr.bf16.mxu0 0
        %676 = vmatpush1.bf16.msra.mxu0 0
        %677 = vmatprep.subr.bf16.mxu0 0
        %678 = vmatpush1.bf16.msra.mxu0 0
        %679 = vmatprep.subr.bf16.mxu0 0
        %680 = vmatpush1.bf16.msra.mxu0 0
        %681 = vmatprep.subr.bf16.mxu0 0
        %682 = vmatpush1.bf16.msra.mxu0 0
        %683 = vmatprep.mubr.bf16.mxu0 0
        %684 = vmatmul.mubr.bf16.gmra.mrb[0].mxu0 %v625
        %v685 = vpop.f32.mrb[0].mxu0
        %v686 = vadd.f32 %v522, %v685
        %v687 = vpop.f32.mrb[0].mxu0
        %v688 = vpop.f32.mrb[0].mxu0
        %v689 = vadd.f32 %v525, %v688
        %v690 = vpop.f32.mrb[0].mxu0
        %691 = vmatprep.mubr.bf16.mxu0 0
        %692 = vmatmul.mubr.bf16.gmra.mrb[0].mxu0 %v628
        %v693 = vpop.f32.mrb[0].mxu0
        %v694 = vadd.f32 %v530, %v693
        %v695 = vpop.f32.mrb[0].mxu0
        %v696 = vpop.f32.mrb[0].mxu0
        %v697 = vadd.f32 %v533, %v696
        %v698 = vpop.f32.mrb[0].mxu0
        %699 = vmatprep.mubr.bf16.mxu0 0
        %700 = vmatmul.mubr.bf16.gmra.mrb[0].mxu0 %v631
        %v701 = vpop.f32.mrb[0].mxu0
        %v702 = vadd.f32 %v538, %v701
        %v703 = vpop.f32.mrb[0].mxu0
        %v704 = vpop.f32.mrb[0].mxu0
        %v705 = vadd.f32 %v541, %v704
        %v706 = vpop.f32.mrb[0].mxu0
        %707 = vmatprep.mubr.bf16.mxu0 0
        %708 = vmatmul.mubr.bf16.gmra.mrb[0].mxu0 %v634
        %v709 = vpop.f32.mrb[0].mxu0
        %v710 = vadd.f32 %v546, %v709
        %v711 = vpop.f32.mrb[0].mxu0
        %v712 = vpop.f32.mrb[0].mxu0
        %v713 = vadd.f32 %v549, %v712
        %v714 = vpop.f32.mrb[0].mxu0
        %715 = vmatprep.mubr.bf16.mxu0 0
        %716 = vmatmul.mubr.bf16.gmra.mrb[0].mxu0 %v637
        %v717 = vpop.f32.mrb[0].mxu0
        %v718 = vadd.f32 %v554, %v717
        %v719 = vpop.f32.mrb[0].mxu0
        %v720 = vpop.f32.mrb[0].mxu0
        %v721 = vadd.f32 %v557, %v720
        %v722 = vpop.f32.mrb[0].mxu0
        %723 = vmatprep.mubr.bf16.mxu0 0
        %724 = vmatmul.mubr.bf16.gmra.mrb[0].mxu0 %v640
        %v725 = vpop.f32.mrb[0].mxu0
        %v726 = vadd.f32 %v562, %v725
        %v727 = vpop.f32.mrb[0].mxu0
        %v728 = vpop.f32.mrb[0].mxu0
        %v729 = vadd.f32 %v565, %v728
        %v730 = vpop.f32.mrb[0].mxu0
        %731 = vmatprep.mubr.bf16.mxu0 0
        %732 = vmatmul.mubr.bf16.gmra.mrb[0].mxu0 %v643
        %v733 = vpop.f32.mrb[0].mxu0
        %v734 = vadd.f32 %v570, %v733
        %v735 = vpop.f32.mrb[0].mxu0
        %v736 = vpop.f32.mrb[0].mxu0
        %v737 = vadd.f32 %v573, %v736
        %v738 = vpop.f32.mrb[0].mxu0
        %739 = vmatprep.mubr.bf16.mxu0 0
        %740 = vmatmul.mubr.bf16.gmra.mrb[0].mxu0 %v646
        %v741 = vpop.f32.mrb[0].mxu0
        %v742 = vadd.f32 %v578, %v741
        %v743 = vpop.f32.mrb[0].mxu0
        %v744 = vpop.f32.mrb[0].mxu0
        %v745 = vadd.f32 %v581, %v744
        %v746 = vpop.f32.mrb[0].mxu0
        %747 = vdwg.mxu0
        %v748 = vld [vmem:[%s209] sm:$0xe]
        %v749 = vld [vmem:[%s209 + $0xc] sm:$0xe]
        %v750 = vld [vmem:[%s209 + $0x18] sm:$0xe]
        %v751 = vld [vmem:[%s209 + $0x24] sm:$0xe]
        %v752 = vld [vmem:[%s209 + $0x30] sm:$0xe]
        %v753 = vld [vmem:[%s209 + $0x3c] sm:$0xe]
        %v754 = vld [vmem:[%s209 + $0x48] sm:$0xe]
        %v755 = vld [vmem:[%s209 + $0x54] sm:$0xe]
        %vm772 = vcmask 1042432
        %vm773 = vcmask 1046532
        %vm774 = vmor %vm772, %vm773
        %v775 = vrot.slane %v748, 5
        %v776 = vrot.slane %v775, 4
        %v777 = vrot.slane %v213, 5
        %v778 = vsel %vm774, %v776, %v777
        %v779 = vrot.slane %v777, 4
        %v780 = vrot.slane %v229, 5
        %v781 = vsel %vm774, %v779, %v780
        %v782 = vrot.slane %v749, 5
        %v783 = vrot.slane %v782, 4
        %v784 = vrot.slane %v215, 5
        %v785 = vsel %vm774, %v783, %v784
        %v786 = vrot.slane %v784, 4
        %v787 = vrot.slane %v230, 5
        %v788 = vsel %vm774, %v786, %v787
        %v789 = vrot.slane %v750, 5
        %v790 = vrot.slane %v789, 4
        %v791 = vrot.slane %v217, 5
        %v792 = vsel %vm774, %v790, %v791
        %v793 = vrot.slane %v791, 4
        %v794 = vrot.slane %v231, 5
        %v795 = vsel %vm774, %v793, %v794
        %v796 = vrot.slane %v751, 5
        %v797 = vrot.slane %v796, 4
        %v798 = vrot.slane %v219, 5
        %v799 = vsel %vm774, %v797, %v798
        %v800 = vrot.slane %v798, 4
        %v801 = vrot.slane %v232, 5
        %v802 = vsel %vm774, %v800, %v801
        %v803 = vrot.slane %v752, 5
        %v804 = vrot.slane %v803, 4
        %v805 = vrot.slane %v221, 5
        %v806 = vsel %vm774, %v804, %v805
        %v807 = vrot.slane %v805, 4
        %v808 = vrot.slane %v233, 5
        %v809 = vsel %vm774, %v807, %v808
        %v810 = vrot.slane %v753, 5
        %v811 = vrot.slane %v810, 4
        %v812 = vrot.slane %v223, 5
        %v813 = vsel %vm774, %v811, %v812
        %v814 = vrot.slane %v812, 4
        %v815 = vrot.slane %v234, 5
        %v816 = vsel %vm774, %v814, %v815
        %v817 = vrot.slane %v754, 5
        %v818 = vrot.slane %v817, 4
        %v819 = vrot.slane %v225, 5
        %v820 = vsel %vm774, %v818, %v819
        %v821 = vrot.slane %v819, 4
        %v822 = vrot.slane %v235, 5
        %v823 = vsel %vm774, %v821, %v822
        %v824 = vrot.slane %v755, 5
        %v825 = vrot.slane %v824, 4
        %v826 = vrot.slane %v227, 5
        %v827 = vsel %vm774, %v825, %v826
        %v828 = vrot.slane %v826, 4
        %v829 = vrot.slane %v236, 5
        %v830 = vsel %vm774, %v828, %v829
        %s831 = scalar_lea.vmem %s1, 4
        %v832 = vld [vmem:[%s831] sm:$0x3]
        %v833 = vunpack.c.l.b16 %v778
        %v834 = vunpack.c.l.b16 %v781
        %v835 = vunpack.c.l.b16 %v785
        %v836 = vunpack.c.l.b16 %v788
        %v837 = vunpack.c.l.b16 %v792
        %v838 = vunpack.c.l.b16 %v795
        %v839 = vunpack.c.l.b16 %v799
        %v840 = vunpack.c.l.b16 %v802
        %v841 = vunpack.c.l.b16 %v806
        %v842 = vunpack.c.l.b16 %v809
        %v843 = vunpack.c.l.b16 %v813
        %v844 = vunpack.c.l.b16 %v816
        %v845 = vunpack.c.l.b16 %v820
        %v846 = vunpack.c.l.b16 %v823
        %v847 = vunpack.c.l.b16 %v827
        %v848 = vunpack.c.l.b16 %v830
        %v849 = vpack.c.b16 %v834, %v833
        %v850 = vpack.c.b16 %v836, %v835
        %v851 = vpack.c.b16 %v838, %v837
        %v852 = vpack.c.b16 %v840, %v839
        %v853 = vpack.c.b16 %v842, %v841
        %v854 = vpack.c.b16 %v844, %v843
        %v855 = vpack.c.b16 %v846, %v845
        %v856 = vpack.c.b16 %v848, %v847
        %v858 = vsel %vm458, %v849, 0
        %v861 = vsel %vm458, %v850, 0
        %v864 = vsel %vm458, %v851, 0
        %v867 = vsel %vm458, %v852, 0
        %v870 = vsel %vm458, %v853, 0
        %v873 = vsel %vm458, %v854, 0
        %v876 = vsel %vm458, %v855, 0
        %v879 = vsel %vm458, %v856, 0
        %v882 = vsel %vm483, %v832, 0
        %884 = vmatprep.subr.bf16.mxu0 0
        %885 = vmatpush1.bf16.msra.mxu0 %v882
        %886 = vmatprep.subr.bf16.mxu0 0
        %887 = vmatpush1.bf16.msra.mxu0 0
        %888 = vmatprep.subr.bf16.mxu0 0
        %889 = vmatpush1.bf16.msra.mxu0 0
        %890 = vmatprep.subr.bf16.mxu0 0
        %891 = vmatpush1.bf16.msra.mxu0 0
        %892 = vmatprep.subr.bf16.mxu0 0
        %893 = vmatpush1.bf16.msra.mxu0 0
        %894 = vmatprep.subr.bf16.mxu0 0
        %895 = vmatpush1.bf16.msra.mxu0 0
        %896 = vmatprep.subr.bf16.mxu0 0
        %897 = vmatpush1.bf16.msra.mxu0 0
        %898 = vmatprep.subr.bf16.mxu0 0
        %899 = vmatpush1.bf16.msra.mxu0 0
        %900 = vmatprep.subr.bf16.mxu0 0
        %901 = vmatpush1.bf16.msra.mxu0 0
        %902 = vmatprep.subr.bf16.mxu0 0
        %903 = vmatpush1.bf16.msra.mxu0 0
        %904 = vmatprep.subr.bf16.mxu0 0
        %905 = vmatpush1.bf16.msra.mxu0 0
        %906 = vmatprep.subr.bf16.mxu0 0
        %907 = vmatpush1.bf16.msra.mxu0 0
        %908 = vmatprep.subr.bf16.mxu0 0
        %909 = vmatpush1.bf16.msra.mxu0 0
        %910 = vmatprep.subr.bf16.mxu0 0
        %911 = vmatpush1.bf16.msra.mxu0 0
        %912 = vmatprep.subr.bf16.mxu0 0
        %913 = vmatpush1.bf16.msra.mxu0 0
        %914 = vmatprep.subr.bf16.mxu0 0
        %915 = vmatpush1.bf16.msra.mxu0 0
        %916 = vmatprep.mubr.bf16.mxu0 0
        %917 = vmatmul.mubr.bf16.gmra.mrb[0].mxu0 %v858
        %v918 = vpop.f32.mrb[0].mxu0
        %v919 = vadd.f32 0.0, %v918
        %v920 = vpop.f32.mrb[0].mxu0
        %v921 = vpop.f32.mrb[0].mxu0
        %v922 = vadd.f32 0.0, %v921
        %v923 = vpop.f32.mrb[0].mxu0
        %924 = vmatprep.mubr.bf16.mxu0 0
        %925 = vmatmul.mubr.bf16.gmra.mrb[0].mxu0 %v861
        %v926 = vpop.f32.mrb[0].mxu0
        %v927 = vadd.f32 0.0, %v926
        %v928 = vpop.f32.mrb[0].mxu0
        %v929 = vpop.f32.mrb[0].mxu0
        %v930 = vadd.f32 0.0, %v929
        %v931 = vpop.f32.mrb[0].mxu0
        %932 = vmatprep.mubr.bf16.mxu0 0
        %933 = vmatmul.mubr.bf16.gmra.mrb[0].mxu0 %v864
        %v934 = vpop.f32.mrb[0].mxu0
        %v935 = vadd.f32 0.0, %v934
        %v936 = vpop.f32.mrb[0].mxu0
        %v937 = vpop.f32.mrb[0].mxu0
        %v938 = vadd.f32 0.0, %v937
        %v939 = vpop.f32.mrb[0].mxu0
        %940 = vmatprep.mubr.bf16.mxu0 0
        %941 = vmatmul.mubr.bf16.gmra.mrb[0].mxu0 %v867
        %v942 = vpop.f32.mrb[0].mxu0
        %v943 = vadd.f32 0.0, %v942
        %v944 = vpop.f32.mrb[0].mxu0
        %v945 = vpop.f32.mrb[0].mxu0
        %v946 = vadd.f32 0.0, %v945
        %v947 = vpop.f32.mrb[0].mxu0
        %948 = vmatprep.mubr.bf16.mxu0 0
        %949 = vmatmul.mubr.bf16.gmra.mrb[0].mxu0 %v870
        %v950 = vpop.f32.mrb[0].mxu0
        %v951 = vadd.f32 0.0, %v950
        %v952 = vpop.f32.mrb[0].mxu0
        %v953 = vpop.f32.mrb[0].mxu0
        %v954 = vadd.f32 0.0, %v953
        %v955 = vpop.f32.mrb[0].mxu0
        %956 = vmatprep.mubr.bf16.mxu0 0
        %957 = vmatmul.mubr.bf16.gmra.mrb[0].mxu0 %v873
        %v958 = vpop.f32.mrb[0].mxu0
        %v959 = vadd.f32 0.0, %v958
        %v960 = vpop.f32.mrb[0].mxu0
        %v961 = vpop.f32.mrb[0].mxu0
        %v962 = vadd.f32 0.0, %v961
        %v963 = vpop.f32.mrb[0].mxu0
        %964 = vmatprep.mubr.bf16.mxu0 0
        %965 = vmatmul.mubr.bf16.gmra.mrb[0].mxu0 %v876
        %v966 = vpop.f32.mrb[0].mxu0
        %v967 = vadd.f32 0.0, %v966
        %v968 = vpop.f32.mrb[0].mxu0
        %v969 = vpop.f32.mrb[0].mxu0
        %v970 = vadd.f32 0.0, %v969
        %v971 = vpop.f32.mrb[0].mxu0
        %972 = vmatprep.mubr.bf16.mxu0 0
        %973 = vmatmul.mubr.bf16.gmra.mrb[0].mxu0 %v879
        %v974 = vpop.f32.mrb[0].mxu0
        %v975 = vadd.f32 0.0, %v974
        %v976 = vpop.f32.mrb[0].mxu0
        %v977 = vpop.f32.mrb[0].mxu0
        %v978 = vadd.f32 0.0, %v977
        %v979 = vpop.f32.mrb[0].mxu0
        %980 = vdwg.mxu0
        %v981 = vadd.f32 %v686, %v919
        %v982 = vadd.f32 %v689, %v922
        %v983 = vadd.f32 %v694, %v927
        %v984 = vadd.f32 %v697, %v930
        %v985 = vadd.f32 %v702, %v935
        %v986 = vadd.f32 %v705, %v938
        %v987 = vadd.f32 %v710, %v943
        %v988 = vadd.f32 %v713, %v946
        %v989 = vadd.f32 %v718, %v951
        %v990 = vadd.f32 %v721, %v954
        %v991 = vadd.f32 %v726, %v959
        %v992 = vadd.f32 %v729, %v962
        %v993 = vadd.f32 %v734, %v967
        %v994 = vadd.f32 %v737, %v970
        %v995 = vadd.f32 %v742, %v975
        %v996 = vadd.f32 %v745, %v978
        %s997 = scalar_lea.vmem %s209, 12
        %v998 = vld [vmem:[%s997] sm:$0xf]
        %v999 = vld [vmem:[%s997 + $0x4] sm:$0xf]
        %v1000 = vld [vmem:[%s997 + $0xc] sm:$0xf]
        %v1001 = vld [vmem:[%s997 + $0x10] sm:$0xf]
        %v1002 = vld [vmem:[%s997 + $0x18] sm:$0xf]
        %v1003 = vld [vmem:[%s997 + $0x1c] sm:$0xf]
        %v1004 = vld [vmem:[%s997 + $0x24] sm:$0xf]
        %v1005 = vld [vmem:[%s997 + $0x28] sm:$0xf]
        %v1006 = vld [vmem:[%s997 + $0x30] sm:$0xf]
        %v1007 = vld [vmem:[%s997 + $0x34] sm:$0xf]
        %v1008 = vld [vmem:[%s997 + $0x3c] sm:$0xf]
        %v1009 = vld [vmem:[%s997 + $0x40] sm:$0xf]
        %v1010 = vld [vmem:[%s997 + $0x48] sm:$0xf]
        %v1011 = vld [vmem:[%s997 + $0x4c] sm:$0xf]
        %v1012 = vld [vmem:[%s997 + $0x54] sm:$0xf]
        %v1013 = vld [vmem:[%s997 + $0x58] sm:$0xf]
        %s1014 = scalar_lea.vmem %s1, 6
        %v1015 = vld [vmem:[%s1014] sm:$0x3]
        %v1032 = vunpack.c.l.b16 %v998
        %v1033 = vunpack.c.l.b16 %v999
        %v1034 = vunpack.c.l.b16 %v1000
        %v1035 = vunpack.c.l.b16 %v1001
        %v1036 = vunpack.c.l.b16 %v1002
        %v1037 = vunpack.c.l.b16 %v1003
        %v1038 = vunpack.c.l.b16 %v1004
        %v1039 = vunpack.c.l.b16 %v1005
        %v1040 = vunpack.c.l.b16 %v1006
        %v1041 = vunpack.c.l.b16 %v1007
        %v1042 = vunpack.c.l.b16 %v1008
        %v1043 = vunpack.c.l.b16 %v1009
        %v1044 = vunpack.c.l.b16 %v1010
        %v1045 = vunpack.c.l.b16 %v1011
        %v1046 = vunpack.c.l.b16 %v1012
        %v1047 = vunpack.c.l.b16 %v1013
        %v1048 = vpack.c.b16 %v1033, %v1032
        %v1049 = vpack.c.b16 %v1035, %v1034
        %v1050 = vpack.c.b16 %v1037, %v1036
        %v1051 = vpack.c.b16 %v1039, %v1038
        %v1052 = vpack.c.b16 %v1041, %v1040
        %v1053 = vpack.c.b16 %v1043, %v1042
        %v1054 = vpack.c.b16 %v1045, %v1044
        %v1055 = vpack.c.b16 %v1047, %v1046
        %v1057 = vsel %vm458, %v1048, 0
        %v1060 = vsel %vm458, %v1049, 0
        %v1063 = vsel %vm458, %v1050, 0
        %v1066 = vsel %vm458, %v1051, 0
        %v1069 = vsel %vm458, %v1052, 0
        %v1072 = vsel %vm458, %v1053, 0
        %v1075 = vsel %vm458, %v1054, 0
        %v1078 = vsel %vm458, %v1055, 0
        %v1081 = vsel %vm483, %v1015, 0
        %1083 = vmatprep.subr.bf16.mxu0 0
        %1084 = vmatpush1.bf16.msra.mxu0 %v1081
        %1085 = vmatprep.subr.bf16.mxu0 0
        %1086 = vmatpush1.bf16.msra.mxu0 0
        %1087 = vmatprep.subr.bf16.mxu0 0
        %1088 = vmatpush1.bf16.msra.mxu0 0
        %1089 = vmatprep.subr.bf16.mxu0 0
        %1090 = vmatpush1.bf16.msra.mxu0 0
        %1091 = vmatprep.subr.bf16.mxu0 0
        %1092 = vmatpush1.bf16.msra.mxu0 0
        %1093 = vmatprep.subr.bf16.mxu0 0
        %1094 = vmatpush1.bf16.msra.mxu0 0
        %1095 = vmatprep.subr.bf16.mxu0 0
        %1096 = vmatpush1.bf16.msra.mxu0 0
        %1097 = vmatprep.subr.bf16.mxu0 0
        %1098 = vmatpush1.bf16.msra.mxu0 0
        %1099 = vmatprep.subr.bf16.mxu0 0
        %1100 = vmatpush1.bf16.msra.mxu0 0
        %1101 = vmatprep.subr.bf16.mxu0 0
        %1102 = vmatpush1.bf16.msra.mxu0 0
        %1103 = vmatprep.subr.bf16.mxu0 0
        %1104 = vmatpush1.bf16.msra.mxu0 0
        %1105 = vmatprep.subr.bf16.mxu0 0
        %1106 = vmatpush1.bf16.msra.mxu0 0
        %1107 = vmatprep.subr.bf16.mxu0 0
        %1108 = vmatpush1.bf16.msra.mxu0 0
        %1109 = vmatprep.subr.bf16.mxu0 0
        %1110 = vmatpush1.bf16.msra.mxu0 0
        %1111 = vmatprep.subr.bf16.mxu0 0
        %1112 = vmatpush1.bf16.msra.mxu0 0
        %1113 = vmatprep.subr.bf16.mxu0 0
        %1114 = vmatpush1.bf16.msra.mxu0 0
        %1115 = vmatprep.mubr.bf16.mxu0 0
        %1116 = vmatmul.mubr.bf16.gmra.mrb[0].mxu0 %v1057
        %v1117 = vpop.f32.mrb[0].mxu0
        %v1118 = vadd.f32 0.0, %v1117
        %v1119 = vpop.f32.mrb[0].mxu0
        %v1120 = vpop.f32.mrb[0].mxu0
        %v1121 = vadd.f32 0.0, %v1120
        %v1122 = vpop.f32.mrb[0].mxu0
        %1123 = vmatprep.mubr.bf16.mxu0 0
        %1124 = vmatmul.mubr.bf16.gmra.mrb[0].mxu0 %v1060
        %v1125 = vpop.f32.mrb[0].mxu0
        %v1126 = vadd.f32 0.0, %v1125
        %v1127 = vpop.f32.mrb[0].mxu0
        %v1128 = vpop.f32.mrb[0].mxu0
        %v1129 = vadd.f32 0.0, %v1128
        %v1130 = vpop.f32.mrb[0].mxu0
        %1131 = vmatprep.mubr.bf16.mxu0 0
        %1132 = vmatmul.mubr.bf16.gmra.mrb[0].mxu0 %v1063
        %v1133 = vpop.f32.mrb[0].mxu0
        %v1134 = vadd.f32 0.0, %v1133
        %v1135 = vpop.f32.mrb[0].mxu0
        %v1136 = vpop.f32.mrb[0].mxu0
        %v1137 = vadd.f32 0.0, %v1136
        %v1138 = vpop.f32.mrb[0].mxu0
        %1139 = vmatprep.mubr.bf16.mxu0 0
        %1140 = vmatmul.mubr.bf16.gmra.mrb[0].mxu0 %v1066
        %v1141 = vpop.f32.mrb[0].mxu0
        %v1142 = vadd.f32 0.0, %v1141
        %v1143 = vpop.f32.mrb[0].mxu0
        %v1144 = vpop.f32.mrb[0].mxu0
        %v1145 = vadd.f32 0.0, %v1144
        %v1146 = vpop.f32.mrb[0].mxu0
        %1147 = vmatprep.mubr.bf16.mxu0 0
        %1148 = vmatmul.mubr.bf16.gmra.mrb[0].mxu0 %v1069
        %v1149 = vpop.f32.mrb[0].mxu0
        %v1150 = vadd.f32 0.0, %v1149
        %v1151 = vpop.f32.mrb[0].mxu0
        %v1152 = vpop.f32.mrb[0].mxu0
        %v1153 = vadd.f32 0.0, %v1152
        %v1154 = vpop.f32.mrb[0].mxu0
        %1155 = vmatprep.mubr.bf16.mxu0 0
        %1156 = vmatmul.mubr.bf16.gmra.mrb[0].mxu0 %v1072
        %v1157 = vpop.f32.mrb[0].mxu0
        %v1158 = vadd.f32 0.0, %v1157
        %v1159 = vpop.f32.mrb[0].mxu0
        %v1160 = vpop.f32.mrb[0].mxu0
        %v1161 = vadd.f32 0.0, %v1160
        %v1162 = vpop.f32.mrb[0].mxu0
        %1163 = vmatprep.mubr.bf16.mxu0 0
        %1164 = vmatmul.mubr.bf16.gmra.mrb[0].mxu0 %v1075
        %v1165 = vpop.f32.mrb[0].mxu0
        %v1166 = vadd.f32 0.0, %v1165
        %v1167 = vpop.f32.mrb[0].mxu0
        %v1168 = vpop.f32.mrb[0].mxu0
        %v1169 = vadd.f32 0.0, %v1168
        %v1170 = vpop.f32.mrb[0].mxu0
        %1171 = vmatprep.mubr.bf16.mxu0 0
        %1172 = vmatmul.mubr.bf16.gmra.mrb[0].mxu0 %v1078
        %v1173 = vpop.f32.mrb[0].mxu0
        %v1174 = vadd.f32 0.0, %v1173
        %v1175 = vpop.f32.mrb[0].mxu0
        %v1176 = vpop.f32.mrb[0].mxu0
        %v1177 = vadd.f32 0.0, %v1176
        %v1178 = vpop.f32.mrb[0].mxu0
        %1179 = vdwg.mxu0
        %v1180 = vadd.f32 %v981, %v1118
        %v1181 = vadd.f32 %v982, %v1121
        %v1182 = vadd.f32 %v983, %v1126
        %v1183 = vadd.f32 %v984, %v1129
        %v1184 = vadd.f32 %v985, %v1134
        %v1185 = vadd.f32 %v986, %v1137
        %v1186 = vadd.f32 %v987, %v1142
        %v1187 = vadd.f32 %v988, %v1145
        %v1188 = vadd.f32 %v989, %v1150
        %v1189 = vadd.f32 %v990, %v1153
        %v1190 = vadd.f32 %v991, %v1158
        %v1191 = vadd.f32 %v992, %v1161
        %v1192 = vadd.f32 %v993, %v1166
        %v1193 = vadd.f32 %v994, %v1169
        %v1194 = vadd.f32 %v995, %v1174
        %v1195 = vadd.f32 %v996, %v1177
        %v1196 = vld [vmem:[%s997] sm:$0xf]
        %v1197 = vld [vmem:[%s997 + $0x4] sm:$0xf]
        %v1198 = vld [vmem:[%s997 + $0x8] sm:$0x1]
        %v1199 = vld [vmem:[%s997 + $0xc] sm:$0xf]
        %v1200 = vld [vmem:[%s997 + $0x10] sm:$0xf]
        %v1201 = vld [vmem:[%s997 + $0x14] sm:$0x1]
        %v1202 = vld [vmem:[%s997 + $0x18] sm:$0xf]
        %v1203 = vld [vmem:[%s997 + $0x1c] sm:$0xf]
        %v1204 = vld [vmem:[%s997 + $0x20] sm:$0x1]
        %v1205 = vld [vmem:[%s997 + $0x24] sm:$0xf]
        %v1206 = vld [vmem:[%s997 + $0x28] sm:$0xf]
        %v1207 = vld [vmem:[%s997 + $0x2c] sm:$0x1]
        %v1208 = vld [vmem:[%s997 + $0x30] sm:$0xf]
        %v1209 = vld [vmem:[%s997 + $0x34] sm:$0xf]
        %v1210 = vld [vmem:[%s997 + $0x38] sm:$0x1]
        %v1211 = vld [vmem:[%s997 + $0x3c] sm:$0xf]
        %v1212 = vld [vmem:[%s997 + $0x40] sm:$0xf]
        %v1213 = vld [vmem:[%s997 + $0x44] sm:$0x1]
        %v1214 = vld [vmem:[%s997 + $0x48] sm:$0xf]
        %v1215 = vld [vmem:[%s997 + $0x4c] sm:$0xf]
        %v1216 = vld [vmem:[%s997 + $0x50] sm:$0x1]
        %v1217 = vld [vmem:[%s997 + $0x54] sm:$0xf]
        %v1218 = vld [vmem:[%s997 + $0x58] sm:$0xf]
        %v1219 = vld [vmem:[%s997 + $0x5c] sm:$0x1]
        %v1221 = vshrl.u32 %v1196, 16
        %v1223 = vrot.slane %v1221, 4
        %v1224 = vshll.u32 %v1196, 16
        %v1226 = vrot.slane %v1224, 5
        %v1227 = vor.u32 %v1223, %v1226
        %v1228 = vrot.slane %v1227, 4
        %v1230 = vshll.u32 %v1197, 16
        %v1232 = vrot.slane %v1230, 5
        %v1233 = vsel %vm239, %v1228, %v1232
        %v1234 = vshrl.u32 %v1197, 16
        %v1236 = vrot.slane %v1234, 4
        %v1237 = vor.u32 %v1236, %v1232
        %v1238 = vrot.slane %v1237, 4
        %v1240 = vshll.u32 %v1198, 16
        %v1242 = vrot.slane %v1240, 5
        %v1243 = vsel %vm239, %v1238, %v1242
        %v1245 = vshrl.u32 %v1199, 16
        %v1247 = vrot.slane %v1245, 4
        %v1248 = vshll.u32 %v1199, 16
        %v1250 = vrot.slane %v1248, 5
        %v1251 = vor.u32 %v1247, %v1250
        %v1252 = vrot.slane %v1251, 4
        %v1254 = vshll.u32 %v1200, 16
        %v1256 = vrot.slane %v1254, 5
        %v1257 = vsel %vm239, %v1252, %v1256
        %v1258 = vshrl.u32 %v1200, 16
        %v1260 = vrot.slane %v1258, 4
        %v1261 = vor.u32 %v1260, %v1256
        %v1262 = vrot.slane %v1261, 4
        %v1264 = vshll.u32 %v1201, 16
        %v1266 = vrot.slane %v1264, 5
        %v1267 = vsel %vm239, %v1262, %v1266
        %v1269 = vshrl.u32 %v1202, 16
        %v1271 = vrot.slane %v1269, 4
        %v1272 = vshll.u32 %v1202, 16
        %v1274 = vrot.slane %v1272, 5
        %v1275 = vor.u32 %v1271, %v1274
        %v1276 = vrot.slane %v1275, 4
        %v1278 = vshll.u32 %v1203, 16
        %v1280 = vrot.slane %v1278, 5
        %v1281 = vsel %vm239, %v1276, %v1280
        %v1282 = vshrl.u32 %v1203, 16
        %v1284 = vrot.slane %v1282, 4
        %v1285 = vor.u32 %v1284, %v1280
        %v1286 = vrot.slane %v1285, 4
        %v1288 = vshll.u32 %v1204, 16
        %v1290 = vrot.slane %v1288, 5
        %v1291 = vsel %vm239, %v1286, %v1290
        %v1293 = vshrl.u32 %v1205, 16
        %v1295 = vrot.slane %v1293, 4
        %v1296 = vshll.u32 %v1205, 16
        %v1298 = vrot.slane %v1296, 5
        %v1299 = vor.u32 %v1295, %v1298
        %v1300 = vrot.slane %v1299, 4
        %v1302 = vshll.u32 %v1206, 16
        %v1304 = vrot.slane %v1302, 5
        %v1305 = vsel %vm239, %v1300, %v1304
        %v1306 = vshrl.u32 %v1206, 16
        %v1308 = vrot.slane %v1306, 4
        %v1309 = vor.u32 %v1308, %v1304
        %v1310 = vrot.slane %v1309, 4
        %v1312 = vshll.u32 %v1207, 16
        %v1314 = vrot.slane %v1312, 5
        %v1315 = vsel %vm239, %v1310, %v1314
        %v1317 = vshrl.u32 %v1208, 16
        %v1319 = vrot.slane %v1317, 4
        %v1320 = vshll.u32 %v1208, 16
        %v1322 = vrot.slane %v1320, 5
        %v1323 = vor.u32 %v1319, %v1322
        %v1324 = vrot.slane %v1323, 4
        %v1326 = vshll.u32 %v1209, 16
        %v1328 = vrot.slane %v1326, 5
        %v1329 = vsel %vm239, %v1324, %v1328
        %v1330 = vshrl.u32 %v1209, 16
        %v1332 = vrot.slane %v1330, 4
        %v1333 = vor.u32 %v1332, %v1328
        %v1334 = vrot.slane %v1333, 4
        %v1336 = vshll.u32 %v1210, 16
        %v1338 = vrot.slane %v1336, 5
        %v1339 = vsel %vm239, %v1334, %v1338
        %v1341 = vshrl.u32 %v1211, 16
        %v1343 = vrot.slane %v1341, 4
        %v1344 = vshll.u32 %v1211, 16
        %v1346 = vrot.slane %v1344, 5
        %v1347 = vor.u32 %v1343, %v1346
        %v1348 = vrot.slane %v1347, 4
        %v1350 = vshll.u32 %v1212, 16
        %v1352 = vrot.slane %v1350, 5
        %v1353 = vsel %vm239, %v1348, %v1352
        %v1354 = vshrl.u32 %v1212, 16
        %v1356 = vrot.slane %v1354, 4
        %v1357 = vor.u32 %v1356, %v1352
        %v1358 = vrot.slane %v1357, 4
        %v1360 = vshll.u32 %v1213, 16
        %v1362 = vrot.slane %v1360, 5
        %v1363 = vsel %vm239, %v1358, %v1362
        %v1365 = vshrl.u32 %v1214, 16
        %v1367 = vrot.slane %v1365, 4
        %v1368 = vshll.u32 %v1214, 16
        %v1370 = vrot.slane %v1368, 5
        %v1371 = vor.u32 %v1367, %v1370
        %v1372 = vrot.slane %v1371, 4
        %v1374 = vshll.u32 %v1215, 16
        %v1376 = vrot.slane %v1374, 5
        %v1377 = vsel %vm239, %v1372, %v1376
        %v1378 = vshrl.u32 %v1215, 16
        %v1380 = vrot.slane %v1378, 4
        %v1381 = vor.u32 %v1380, %v1376
        %v1382 = vrot.slane %v1381, 4
        %v1384 = vshll.u32 %v1216, 16
        %v1386 = vrot.slane %v1384, 5
        %v1387 = vsel %vm239, %v1382, %v1386
        %v1389 = vshrl.u32 %v1217, 16
        %v1391 = vrot.slane %v1389, 4
        %v1392 = vshll.u32 %v1217, 16
        %v1394 = vrot.slane %v1392, 5
        %v1395 = vor.u32 %v1391, %v1394
        %v1396 = vrot.slane %v1395, 4
        %v1398 = vshll.u32 %v1218, 16
        %v1400 = vrot.slane %v1398, 5
        %v1401 = vsel %vm239, %v1396, %v1400
        %v1402 = vshrl.u32 %v1218, 16
        %v1404 = vrot.slane %v1402, 4
        %v1405 = vor.u32 %v1404, %v1400
        %v1406 = vrot.slane %v1405, 4
        %v1408 = vshll.u32 %v1219, 16
        %v1410 = vrot.slane %v1408, 5
        %v1411 = vsel %vm239, %v1406, %v1410
        %s1412 = scalar_lea.vmem %s1, 8
        %v1413 = vld [vmem:[%s1412] sm:$0x3]
        %v1414 = vunpack.c.l.b16 %v1233
        %v1415 = vunpack.c.l.b16 %v1243
        %v1416 = vunpack.c.l.b16 %v1257
        %v1417 = vunpack.c.l.b16 %v1267
        %v1418 = vunpack.c.l.b16 %v1281
        %v1419 = vunpack.c.l.b16 %v1291
        %v1420 = vunpack.c.l.b16 %v1305
        %v1421 = vunpack.c.l.b16 %v1315
        %v1422 = vunpack.c.l.b16 %v1329
        %v1423 = vunpack.c.l.b16 %v1339
        %v1424 = vunpack.c.l.b16 %v1353
        %v1425 = vunpack.c.l.b16 %v1363
        %v1426 = vunpack.c.l.b16 %v1377
        %v1427 = vunpack.c.l.b16 %v1387
        %v1428 = vunpack.c.l.b16 %v1401
        %v1429 = vunpack.c.l.b16 %v1411
        %v1430 = vpack.c.b16 %v1415, %v1414
        %v1431 = vpack.c.b16 %v1417, %v1416
        %v1432 = vpack.c.b16 %v1419, %v1418
        %v1433 = vpack.c.b16 %v1421, %v1420
        %v1434 = vpack.c.b16 %v1423, %v1422
        %v1435 = vpack.c.b16 %v1425, %v1424
        %v1436 = vpack.c.b16 %v1427, %v1426
        %v1437 = vpack.c.b16 %v1429, %v1428
        %v1439 = vsel %vm458, %v1430, 0
        %v1442 = vsel %vm458, %v1431, 0
        %v1445 = vsel %vm458, %v1432, 0
        %v1448 = vsel %vm458, %v1433, 0
        %v1451 = vsel %vm458, %v1434, 0
        %v1454 = vsel %vm458, %v1435, 0
        %v1457 = vsel %vm458, %v1436, 0
        %v1460 = vsel %vm458, %v1437, 0
        %v1463 = vsel %vm483, %v1413, 0
        %1465 = vmatprep.subr.bf16.mxu0 0
        %1466 = vmatpush1.bf16.msra.mxu0 %v1463
        %1467 = vmatprep.subr.bf16.mxu0 0
        %1468 = vmatpush1.bf16.msra.mxu0 0
        %1469 = vmatprep.subr.bf16.mxu0 0
        %1470 = vmatpush1.bf16.msra.mxu0 0
        %1471 = vmatprep.subr.bf16.mxu0 0
        %1472 = vmatpush1.bf16.msra.mxu0 0
        %1473 = vmatprep.subr.bf16.mxu0 0
        %1474 = vmatpush1.bf16.msra.mxu0 0
        %1475 = vmatprep.subr.bf16.mxu0 0
        %1476 = vmatpush1.bf16.msra.mxu0 0
        %1477 = vmatprep.subr.bf16.mxu0 0
        %1478 = vmatpush1.bf16.msra.mxu0 0
        %1479 = vmatprep.subr.bf16.mxu0 0
        %1480 = vmatpush1.bf16.msra.mxu0 0
        %1481 = vmatprep.subr.bf16.mxu0 0
        %1482 = vmatpush1.bf16.msra.mxu0 0
        %1483 = vmatprep.subr.bf16.mxu0 0
        %1484 = vmatpush1.bf16.msra.mxu0 0
        %1485 = vmatprep.subr.bf16.mxu0 0
        %1486 = vmatpush1.bf16.msra.mxu0 0
        %1487 = vmatprep.subr.bf16.mxu0 0
        %1488 = vmatpush1.bf16.msra.mxu0 0
        %1489 = vmatprep.subr.bf16.mxu0 0
        %1490 = vmatpush1.bf16.msra.mxu0 0
        %1491 = vmatprep.subr.bf16.mxu0 0
        %1492 = vmatpush1.bf16.msra.mxu0 0
        %1493 = vmatprep.subr.bf16.mxu0 0
        %1494 = vmatpush1.bf16.msra.mxu0 0
        %1495 = vmatprep.subr.bf16.mxu0 0
        %1496 = vmatpush1.bf16.msra.mxu0 0
        %1497 = vmatprep.mubr.bf16.mxu0 0
        %1498 = vmatmul.mubr.bf16.gmra.mrb[0].mxu0 %v1439
        %v1499 = vpop.f32.mrb[0].mxu0
        %v1500 = vadd.f32 0.0, %v1499
        %v1501 = vpop.f32.mrb[0].mxu0
        %v1502 = vpop.f32.mrb[0].mxu0
        %v1503 = vadd.f32 0.0, %v1502
        %v1504 = vpop.f32.mrb[0].mxu0
        %1505 = vmatprep.mubr.bf16.mxu0 0
        %1506 = vmatmul.mubr.bf16.gmra.mrb[0].mxu0 %v1442
        %v1507 = vpop.f32.mrb[0].mxu0
        %v1508 = vadd.f32 0.0, %v1507
        %v1509 = vpop.f32.mrb[0].mxu0
        %v1510 = vpop.f32.mrb[0].mxu0
        %v1511 = vadd.f32 0.0, %v1510
        %v1512 = vpop.f32.mrb[0].mxu0
        %1513 = vmatprep.mubr.bf16.mxu0 0
        %1514 = vmatmul.mubr.bf16.gmra.mrb[0].mxu0 %v1445
        %v1515 = vpop.f32.mrb[0].mxu0
        %v1516 = vadd.f32 0.0, %v1515
        %v1517 = vpop.f32.mrb[0].mxu0
        %v1518 = vpop.f32.mrb[0].mxu0
        %v1519 = vadd.f32 0.0, %v1518
        %v1520 = vpop.f32.mrb[0].mxu0
        %1521 = vmatprep.mubr.bf16.mxu0 0
        %1522 = vmatmul.mubr.bf16.gmra.mrb[0].mxu0 %v1448
        %v1523 = vpop.f32.mrb[0].mxu0
        %v1524 = vadd.f32 0.0, %v1523
        %v1525 = vpop.f32.mrb[0].mxu0
        %v1526 = vpop.f32.mrb[0].mxu0
        %v1527 = vadd.f32 0.0, %v1526
        %v1528 = vpop.f32.mrb[0].mxu0
        %1529 = vmatprep.mubr.bf16.mxu0 0
        %1530 = vmatmul.mubr.bf16.gmra.mrb[0].mxu0 %v1451
        %v1531 = vpop.f32.mrb[0].mxu0
        %v1532 = vadd.f32 0.0, %v1531
        %v1533 = vpop.f32.mrb[0].mxu0
        %v1534 = vpop.f32.mrb[0].mxu0
        %v1535 = vadd.f32 0.0, %v1534
        %v1536 = vpop.f32.mrb[0].mxu0
        %1537 = vmatprep.mubr.bf16.mxu0 0
        %1538 = vmatmul.mubr.bf16.gmra.mrb[0].mxu0 %v1454
        %v1539 = vpop.f32.mrb[0].mxu0
        %v1540 = vadd.f32 0.0, %v1539
        %v1541 = vpop.f32.mrb[0].mxu0
        %v1542 = vpop.f32.mrb[0].mxu0
        %v1543 = vadd.f32 0.0, %v1542
        %v1544 = vpop.f32.mrb[0].mxu0
        %1545 = vmatprep.mubr.bf16.mxu0 0
        %1546 = vmatmul.mubr.bf16.gmra.mrb[0].mxu0 %v1457
        %v1547 = vpop.f32.mrb[0].mxu0
        %v1548 = vadd.f32 0.0, %v1547
        %v1549 = vpop.f32.mrb[0].mxu0
        %v1550 = vpop.f32.mrb[0].mxu0
        %v1551 = vadd.f32 0.0, %v1550
        %v1552 = vpop.f32.mrb[0].mxu0
        %1553 = vmatprep.mubr.bf16.mxu0 0
        %1554 = vmatmul.mubr.bf16.gmra.mrb[0].mxu0 %v1460
        %v1555 = vpop.f32.mrb[0].mxu0
        %v1556 = vadd.f32 0.0, %v1555
        %v1557 = vpop.f32.mrb[0].mxu0
        %v1558 = vpop.f32.mrb[0].mxu0
        %v1559 = vadd.f32 0.0, %v1558
        %v1560 = vpop.f32.mrb[0].mxu0
        %1561 = vdwg.mxu0
        %v1562 = vadd.f32 %v1180, %v1500
        %v1563 = vadd.f32 %v1181, %v1503
        %v1564 = vadd.f32 %v1182, %v1508
        %v1565 = vadd.f32 %v1183, %v1511
        %v1566 = vadd.f32 %v1184, %v1516
        %v1567 = vadd.f32 %v1185, %v1519
        %v1568 = vadd.f32 %v1186, %v1524
        %v1569 = vadd.f32 %v1187, %v1527
        %v1570 = vadd.f32 %v1188, %v1532
        %v1571 = vadd.f32 %v1189, %v1535
        %v1572 = vadd.f32 %v1190, %v1540
        %v1573 = vadd.f32 %v1191, %v1543
        %v1574 = vadd.f32 %v1192, %v1548
        %v1575 = vadd.f32 %v1193, %v1551
        %v1576 = vadd.f32 %v1194, %v1556
        %v1577 = vadd.f32 %v1195, %v1559
        %v1578 = vld [vmem:[%s997] sm:$0xe]
        %v1579 = vld [vmem:[%s997 + $0xc] sm:$0xe]
        %v1580 = vld [vmem:[%s997 + $0x18] sm:$0xe]
        %v1581 = vld [vmem:[%s997 + $0x24] sm:$0xe]
        %v1582 = vld [vmem:[%s997 + $0x30] sm:$0xe]
        %v1583 = vld [vmem:[%s997 + $0x3c] sm:$0xe]
        %v1584 = vld [vmem:[%s997 + $0x48] sm:$0xe]
        %v1585 = vld [vmem:[%s997 + $0x54] sm:$0xe]
        %v1610 = vrot.slane %v1578, 5
        %v1611 = vrot.slane %v1610, 4
        %v1612 = vrot.slane %v1197, 5
        %v1613 = vsel %vm774, %v1611, %v1612
        %v1614 = vrot.slane %v1612, 4
        %v1615 = vrot.slane %v1198, 5
        %v1616 = vsel %vm774, %v1614, %v1615
        %v1617 = vrot.slane %v1579, 5
        %v1618 = vrot.slane %v1617, 4
        %v1619 = vrot.slane %v1200, 5
        %v1620 = vsel %vm774, %v1618, %v1619
        %v1621 = vrot.slane %v1619, 4
        %v1622 = vrot.slane %v1201, 5
        %v1623 = vsel %vm774, %v1621, %v1622
        %v1624 = vrot.slane %v1580, 5
        %v1625 = vrot.slane %v1624, 4
        %v1626 = vrot.slane %v1203, 5
        %v1627 = vsel %vm774, %v1625, %v1626
        %v1628 = vrot.slane %v1626, 4
        %v1629 = vrot.slane %v1204, 5
        %v1630 = vsel %vm774, %v1628, %v1629
        %v1631 = vrot.slane %v1581, 5
        %v1632 = vrot.slane %v1631, 4
        %v1633 = vrot.slane %v1206, 5
        %v1634 = vsel %vm774, %v1632, %v1633
        %v1635 = vrot.slane %v1633, 4
        %v1636 = vrot.slane %v1207, 5
        %v1637 = vsel %vm774, %v1635, %v1636
        %v1638 = vrot.slane %v1582, 5
        %v1639 = vrot.slane %v1638, 4
        %v1640 = vrot.slane %v1209, 5
        %v1641 = vsel %vm774, %v1639, %v1640
        %v1642 = vrot.slane %v1640, 4
        %v1643 = vrot.slane %v1210, 5
        %v1644 = vsel %vm774, %v1642, %v1643
        %v1645 = vrot.slane %v1583, 5
        %v1646 = vrot.slane %v1645, 4
        %v1647 = vrot.slane %v1212, 5
        %v1648 = vsel %vm774, %v1646, %v1647
        %v1649 = vrot.slane %v1647, 4
        %v1650 = vrot.slane %v1213, 5
        %v1651 = vsel %vm774, %v1649, %v1650
        %v1652 = vrot.slane %v1584, 5
        %v1653 = vrot.slane %v1652, 4
        %v1654 = vrot.slane %v1215, 5
        %v1655 = vsel %vm774, %v1653, %v1654
        %v1656 = vrot.slane %v1654, 4
        %v1657 = vrot.slane %v1216, 5
        %v1658 = vsel %vm774, %v1656, %v1657
        %v1659 = vrot.slane %v1585, 5
        %v1660 = vrot.slane %v1659, 4
        %v1661 = vrot.slane %v1218, 5
        %v1662 = vsel %vm774, %v1660, %v1661
        %v1663 = vrot.slane %v1661, 4
        %v1664 = vrot.slane %v1219, 5
        %v1665 = vsel %vm774, %v1663, %v1664
        %s1666 = scalar_lea.vmem %s1, 10
        %v1667 = vld [vmem:[%s1666] sm:$0x3]
        %v1668 = vunpack.c.l.b16 %v1613
        %v1669 = vunpack.c.l.b16 %v1616
        %v1670 = vunpack.c.l.b16 %v1620
        %v1671 = vunpack.c.l.b16 %v1623
        %v1672 = vunpack.c.l.b16 %v1627
        %v1673 = vunpack.c.l.b16 %v1630
        %v1674 = vunpack.c.l.b16 %v1634
        %v1675 = vunpack.c.l.b16 %v1637
        %v1676 = vunpack.c.l.b16 %v1641
        %v1677 = vunpack.c.l.b16 %v1644
        %v1678 = vunpack.c.l.b16 %v1648
        %v1679 = vunpack.c.l.b16 %v1651
        %v1680 = vunpack.c.l.b16 %v1655
        %v1681 = vunpack.c.l.b16 %v1658
        %v1682 = vunpack.c.l.b16 %v1662
        %v1683 = vunpack.c.l.b16 %v1665
        %v1684 = vpack.c.b16 %v1669, %v1668
        %v1685 = vpack.c.b16 %v1671, %v1670
        %v1686 = vpack.c.b16 %v1673, %v1672
        %v1687 = vpack.c.b16 %v1675, %v1674
        %v1688 = vpack.c.b16 %v1677, %v1676
        %v1689 = vpack.c.b16 %v1679, %v1678
        %v1690 = vpack.c.b16 %v1681, %v1680
        %v1691 = vpack.c.b16 %v1683, %v1682
        %v1693 = vsel %vm458, %v1684, 0
        %v1696 = vsel %vm458, %v1685, 0
        %v1699 = vsel %vm458, %v1686, 0
        %v1702 = vsel %vm458, %v1687, 0
        %v1705 = vsel %vm458, %v1688, 0
        %v1708 = vsel %vm458, %v1689, 0
        %v1711 = vsel %vm458, %v1690, 0
        %v1714 = vsel %vm458, %v1691, 0
        %v1717 = vsel %vm483, %v1667, 0
        %1719 = vmatprep.subr.bf16.mxu0 0
        %1720 = vmatpush1.bf16.msra.mxu0 %v1717
        %1721 = vmatprep.subr.bf16.mxu0 0
        %1722 = vmatpush1.bf16.msra.mxu0 0
        %1723 = vmatprep.subr.bf16.mxu0 0
        %1724 = vmatpush1.bf16.msra.mxu0 0
        %1725 = vmatprep.subr.bf16.mxu0 0
        %1726 = vmatpush1.bf16.msra.mxu0 0
        %1727 = vmatprep.subr.bf16.mxu0 0
        %1728 = vmatpush1.bf16.msra.mxu0 0
        %1729 = vmatprep.subr.bf16.mxu0 0
        %1730 = vmatpush1.bf16.msra.mxu0 0
        %1731 = vmatprep.subr.bf16.mxu0 0
        %1732 = vmatpush1.bf16.msra.mxu0 0
        %1733 = vmatprep.subr.bf16.mxu0 0
        %1734 = vmatpush1.bf16.msra.mxu0 0
        %1735 = vmatprep.subr.bf16.mxu0 0
        %1736 = vmatpush1.bf16.msra.mxu0 0
        %1737 = vmatprep.subr.bf16.mxu0 0
        %1738 = vmatpush1.bf16.msra.mxu0 0
        %1739 = vmatprep.subr.bf16.mxu0 0
        %1740 = vmatpush1.bf16.msra.mxu0 0
        %1741 = vmatprep.subr.bf16.mxu0 0
        %1742 = vmatpush1.bf16.msra.mxu0 0
        %1743 = vmatprep.subr.bf16.mxu0 0
        %1744 = vmatpush1.bf16.msra.mxu0 0
        %1745 = vmatprep.subr.bf16.mxu0 0
        %1746 = vmatpush1.bf16.msra.mxu0 0
        %1747 = vmatprep.subr.bf16.mxu0 0
        %1748 = vmatpush1.bf16.msra.mxu0 0
        %1749 = vmatprep.subr.bf16.mxu0 0
        %1750 = vmatpush1.bf16.msra.mxu0 0
        %1751 = vmatprep.mubr.bf16.mxu0 0
        %1752 = vmatmul.mubr.bf16.gmra.mrb[0].mxu0 %v1693
        %v1753 = vpop.f32.mrb[0].mxu0
        %v1754 = vadd.f32 0.0, %v1753
        %v1755 = vpop.f32.mrb[0].mxu0
        %v1756 = vpop.f32.mrb[0].mxu0
        %v1757 = vadd.f32 0.0, %v1756
        %v1758 = vpop.f32.mrb[0].mxu0
        %1759 = vmatprep.mubr.bf16.mxu0 0
        %1760 = vmatmul.mubr.bf16.gmra.mrb[0].mxu0 %v1696
        %v1761 = vpop.f32.mrb[0].mxu0
        %v1762 = vadd.f32 0.0, %v1761
        %v1763 = vpop.f32.mrb[0].mxu0
        %v1764 = vpop.f32.mrb[0].mxu0
        %v1765 = vadd.f32 0.0, %v1764
        %v1766 = vpop.f32.mrb[0].mxu0
        %1767 = vmatprep.mubr.bf16.mxu0 0
        %1768 = vmatmul.mubr.bf16.gmra.mrb[0].mxu0 %v1699
        %v1769 = vpop.f32.mrb[0].mxu0
        %v1770 = vadd.f32 0.0, %v1769
        %v1771 = vpop.f32.mrb[0].mxu0
        %v1772 = vpop.f32.mrb[0].mxu0
        %v1773 = vadd.f32 0.0, %v1772
        %v1774 = vpop.f32.mrb[0].mxu0
        %1775 = vmatprep.mubr.bf16.mxu0 0
        %1776 = vmatmul.mubr.bf16.gmra.mrb[0].mxu0 %v1702
        %v1777 = vpop.f32.mrb[0].mxu0
        %v1778 = vadd.f32 0.0, %v1777
        %v1779 = vpop.f32.mrb[0].mxu0
        %v1780 = vpop.f32.mrb[0].mxu0
        %v1781 = vadd.f32 0.0, %v1780
        %v1782 = vpop.f32.mrb[0].mxu0
        %1783 = vmatprep.mubr.bf16.mxu0 0
        %1784 = vmatmul.mubr.bf16.gmra.mrb[0].mxu0 %v1705
        %v1785 = vpop.f32.mrb[0].mxu0
        %v1786 = vadd.f32 0.0, %v1785
        %v1787 = vpop.f32.mrb[0].mxu0
        %v1788 = vpop.f32.mrb[0].mxu0
        %v1789 = vadd.f32 0.0, %v1788
        %v1790 = vpop.f32.mrb[0].mxu0
        %1791 = vmatprep.mubr.bf16.mxu0 0
        %1792 = vmatmul.mubr.bf16.gmra.mrb[0].mxu0 %v1708
        %v1793 = vpop.f32.mrb[0].mxu0
        %v1794 = vadd.f32 0.0, %v1793
        %v1795 = vpop.f32.mrb[0].mxu0
        %v1796 = vpop.f32.mrb[0].mxu0
        %v1797 = vadd.f32 0.0, %v1796
        %v1798 = vpop.f32.mrb[0].mxu0
        %1799 = vmatprep.mubr.bf16.mxu0 0
        %1800 = vmatmul.mubr.bf16.gmra.mrb[0].mxu0 %v1711
        %v1801 = vpop.f32.mrb[0].mxu0
        %v1802 = vadd.f32 0.0, %v1801
        %v1803 = vpop.f32.mrb[0].mxu0
        %v1804 = vpop.f32.mrb[0].mxu0
        %v1805 = vadd.f32 0.0, %v1804
        %v1806 = vpop.f32.mrb[0].mxu0
        %1807 = vmatprep.mubr.bf16.mxu0 0
        %1808 = vmatmul.mubr.bf16.gmra.mrb[0].mxu0 %v1714
        %v1809 = vpop.f32.mrb[0].mxu0
        %v1810 = vadd.f32 0.0, %v1809
        %v1811 = vpop.f32.mrb[0].mxu0
        %v1812 = vpop.f32.mrb[0].mxu0
        %v1813 = vadd.f32 0.0, %v1812
        %v1814 = vpop.f32.mrb[0].mxu0
        %1815 = vdwg.mxu0
        %v1816 = vadd.f32 %v1562, %v1754
        %v1817 = vadd.f32 %v1563, %v1757
        %v1818 = vadd.f32 %v1564, %v1762
        %v1819 = vadd.f32 %v1565, %v1765
        %v1820 = vadd.f32 %v1566, %v1770
        %v1821 = vadd.f32 %v1567, %v1773
        %v1822 = vadd.f32 %v1568, %v1778
        %v1823 = vadd.f32 %v1569, %v1781
        %v1824 = vadd.f32 %v1570, %v1786
        %v1825 = vadd.f32 %v1571, %v1789
        %v1826 = vadd.f32 %v1572, %v1794
        %v1827 = vadd.f32 %v1573, %v1797
        %v1828 = vadd.f32 %v1574, %v1802
        %v1829 = vadd.f32 %v1575, %v1805
        %v1830 = vadd.f32 %v1576, %v1810
        %v1831 = vadd.f32 %v1577, %v1813
        %s1832 = scalar_lea.vmem %s209, 24
        %v1833 = vld [vmem:[%s1832] sm:$0xf]
        %v1834 = vld [vmem:[%s1832 + $0x4] sm:$0xf]
        %v1835 = vld [vmem:[%s1832 + $0xc] sm:$0xf]
        %v1836 = vld [vmem:[%s1832 + $0x10] sm:$0xf]
        %v1837 = vld [vmem:[%s1832 + $0x18] sm:$0xf]
        %v1838 = vld [vmem:[%s1832 + $0x1c] sm:$0xf]
        %v1839 = vld [vmem:[%s1832 + $0x24] sm:$0xf]
        %v1840 = vld [vmem:[%s1832 + $0x28] sm:$0xf]
        %v1841 = vld [vmem:[%s1832 + $0x30] sm:$0xf]
        %v1842 = vld [vmem:[%s1832 + $0x34] sm:$0xf]
        %v1843 = vld [vmem:[%s1832 + $0x3c] sm:$0xf]
        %v1844 = vld [vmem:[%s1832 + $0x40] sm:$0xf]
        %v1845 = vld [vmem:[%s1832 + $0x48] sm:$0xf]
        %v1846 = vld [vmem:[%s1832 + $0x4c] sm:$0xf]
        %v1847 = vld [vmem:[%s1832 + $0x54] sm:$0xf]
        %v1848 = vld [vmem:[%s1832 + $0x58] sm:$0xf]
        %s1849 = scalar_lea.vmem %s1, 12
        %v1850 = vld [vmem:[%s1849] sm:$0x3]
        %v1867 = vunpack.c.l.b16 %v1833
        %v1868 = vunpack.c.l.b16 %v1834
        %v1869 = vunpack.c.l.b16 %v1835
        %v1870 = vunpack.c.l.b16 %v1836
        %v1871 = vunpack.c.l.b16 %v1837
        %v1872 = vunpack.c.l.b16 %v1838
        %v1873 = vunpack.c.l.b16 %v1839
        %v1874 = vunpack.c.l.b16 %v1840
        %v1875 = vunpack.c.l.b16 %v1841
        %v1876 = vunpack.c.l.b16 %v1842
        %v1877 = vunpack.c.l.b16 %v1843
        %v1878 = vunpack.c.l.b16 %v1844
        %v1879 = vunpack.c.l.b16 %v1845
        %v1880 = vunpack.c.l.b16 %v1846
        %v1881 = vunpack.c.l.b16 %v1847
        %v1882 = vunpack.c.l.b16 %v1848
        %v1883 = vpack.c.b16 %v1868, %v1867
        %v1884 = vpack.c.b16 %v1870, %v1869
        %v1885 = vpack.c.b16 %v1872, %v1871
        %v1886 = vpack.c.b16 %v1874, %v1873
        %v1887 = vpack.c.b16 %v1876, %v1875
        %v1888 = vpack.c.b16 %v1878, %v1877
        %v1889 = vpack.c.b16 %v1880, %v1879
        %v1890 = vpack.c.b16 %v1882, %v1881
        %v1892 = vsel %vm458, %v1883, 0
        %v1895 = vsel %vm458, %v1884, 0
        %v1898 = vsel %vm458, %v1885, 0
        %v1901 = vsel %vm458, %v1886, 0
        %v1904 = vsel %vm458, %v1887, 0
        %v1907 = vsel %vm458, %v1888, 0
        %v1910 = vsel %vm458, %v1889, 0
        %v1913 = vsel %vm458, %v1890, 0
        %v1916 = vsel %vm483, %v1850, 0
        %1918 = vmatprep.subr.bf16.mxu0 0
        %1919 = vmatpush1.bf16.msra.mxu0 %v1916
        %1920 = vmatprep.subr.bf16.mxu0 0
        %1921 = vmatpush1.bf16.msra.mxu0 0
        %1922 = vmatprep.subr.bf16.mxu0 0
        %1923 = vmatpush1.bf16.msra.mxu0 0
        %1924 = vmatprep.subr.bf16.mxu0 0
        %1925 = vmatpush1.bf16.msra.mxu0 0
        %1926 = vmatprep.subr.bf16.mxu0 0
        %1927 = vmatpush1.bf16.msra.mxu0 0
        %1928 = vmatprep.subr.bf16.mxu0 0
        %1929 = vmatpush1.bf16.msra.mxu0 0
        %1930 = vmatprep.subr.bf16.mxu0 0
        %1931 = vmatpush1.bf16.msra.mxu0 0
        %1932 = vmatprep.subr.bf16.mxu0 0
        %1933 = vmatpush1.bf16.msra.mxu0 0
        %1934 = vmatprep.subr.bf16.mxu0 0
        %1935 = vmatpush1.bf16.msra.mxu0 0
        %1936 = vmatprep.subr.bf16.mxu0 0
        %1937 = vmatpush1.bf16.msra.mxu0 0
        %1938 = vmatprep.subr.bf16.mxu0 0
        %1939 = vmatpush1.bf16.msra.mxu0 0
        %1940 = vmatprep.subr.bf16.mxu0 0
        %1941 = vmatpush1.bf16.msra.mxu0 0
        %1942 = vmatprep.subr.bf16.mxu0 0
        %1943 = vmatpush1.bf16.msra.mxu0 0
        %1944 = vmatprep.subr.bf16.mxu0 0
        %1945 = vmatpush1.bf16.msra.mxu0 0
        %1946 = vmatprep.subr.bf16.mxu0 0
        %1947 = vmatpush1.bf16.msra.mxu0 0
        %1948 = vmatprep.subr.bf16.mxu0 0
        %1949 = vmatpush1.bf16.msra.mxu0 0
        %1950 = vmatprep.mubr.bf16.mxu0 0
        %1951 = vmatmul.mubr.bf16.gmra.mrb[0].mxu0 %v1892
        %v1952 = vpop.f32.mrb[0].mxu0
        %v1953 = vadd.f32 0.0, %v1952
        %v1954 = vpop.f32.mrb[0].mxu0
        %v1955 = vpop.f32.mrb[0].mxu0
        %v1956 = vadd.f32 0.0, %v1955
        %v1957 = vpop.f32.mrb[0].mxu0
        %1958 = vmatprep.mubr.bf16.mxu0 0
        %1959 = vmatmul.mubr.bf16.gmra.mrb[0].mxu0 %v1895
        %v1960 = vpop.f32.mrb[0].mxu0
        %v1961 = vadd.f32 0.0, %v1960
        %v1962 = vpop.f32.mrb[0].mxu0
        %v1963 = vpop.f32.mrb[0].mxu0
        %v1964 = vadd.f32 0.0, %v1963
        %v1965 = vpop.f32.mrb[0].mxu0
        %1966 = vmatprep.mubr.bf16.mxu0 0
        %1967 = vmatmul.mubr.bf16.gmra.mrb[0].mxu0 %v1898
        %v1968 = vpop.f32.mrb[0].mxu0
        %v1969 = vadd.f32 0.0, %v1968
        %v1970 = vpop.f32.mrb[0].mxu0
        %v1971 = vpop.f32.mrb[0].mxu0
        %v1972 = vadd.f32 0.0, %v1971
        %v1973 = vpop.f32.mrb[0].mxu0
        %1974 = vmatprep.mubr.bf16.mxu0 0
        %1975 = vmatmul.mubr.bf16.gmra.mrb[0].mxu0 %v1901
        %v1976 = vpop.f32.mrb[0].mxu0
        %v1977 = vadd.f32 0.0, %v1976
        %v1978 = vpop.f32.mrb[0].mxu0
        %v1979 = vpop.f32.mrb[0].mxu0
        %v1980 = vadd.f32 0.0, %v1979
        %v1981 = vpop.f32.mrb[0].mxu0
        %1982 = vmatprep.mubr.bf16.mxu0 0
        %1983 = vmatmul.mubr.bf16.gmra.mrb[0].mxu0 %v1904
        %v1984 = vpop.f32.mrb[0].mxu0
        %v1985 = vadd.f32 0.0, %v1984
        %v1986 = vpop.f32.mrb[0].mxu0
        %v1987 = vpop.f32.mrb[0].mxu0
        %v1988 = vadd.f32 0.0, %v1987
        %v1989 = vpop.f32.mrb[0].mxu0
        %1990 = vmatprep.mubr.bf16.mxu0 0
        %1991 = vmatmul.mubr.bf16.gmra.mrb[0].mxu0 %v1907
        %v1992 = vpop.f32.mrb[0].mxu0
        %v1993 = vadd.f32 0.0, %v1992
        %v1994 = vpop.f32.mrb[0].mxu0
        %v1995 = vpop.f32.mrb[0].mxu0
        %v1996 = vadd.f32 0.0, %v1995
        %v1997 = vpop.f32.mrb[0].mxu0
        %1998 = vmatprep.mubr.bf16.mxu0 0
        %1999 = vmatmul.mubr.bf16.gmra.mrb[0].mxu0 %v1910
        %v2000 = vpop.f32.mrb[0].mxu0
        %v2001 = vadd.f32 0.0, %v2000
        %v2002 = vpop.f32.mrb[0].mxu0
        %v2003 = vpop.f32.mrb[0].mxu0
        %v2004 = vadd.f32 0.0, %v2003
        %v2005 = vpop.f32.mrb[0].mxu0
        %2006 = vmatprep.mubr.bf16.mxu0 0
        %2007 = vmatmul.mubr.bf16.gmra.mrb[0].mxu0 %v1913
        %v2008 = vpop.f32.mrb[0].mxu0
        %v2009 = vadd.f32 0.0, %v2008
        %v2010 = vpop.f32.mrb[0].mxu0
        %v2011 = vpop.f32.mrb[0].mxu0
        %v2012 = vadd.f32 0.0, %v2011
        %v2013 = vpop.f32.mrb[0].mxu0
        %2014 = vdwg.mxu0
        %v2015 = vadd.f32 %v1816, %v1953
        %v2016 = vadd.f32 %v1817, %v1956
        %v2017 = vadd.f32 %v1818, %v1961
        %v2018 = vadd.f32 %v1819, %v1964
        %v2019 = vadd.f32 %v1820, %v1969
        %v2020 = vadd.f32 %v1821, %v1972
        %v2021 = vadd.f32 %v1822, %v1977
        %v2022 = vadd.f32 %v1823, %v1980
        %v2023 = vadd.f32 %v1824, %v1985
        %v2024 = vadd.f32 %v1825, %v1988
        %v2025 = vadd.f32 %v1826, %v1993
        %v2026 = vadd.f32 %v1827, %v1996
        %v2027 = vadd.f32 %v1828, %v2001
        %v2028 = vadd.f32 %v1829, %v2004
        %v2029 = vadd.f32 %v1830, %v2009
        %v2030 = vadd.f32 %v1831, %v2012
        %v2031 = vld [vmem:[%s1832] sm:$0xf]
        %v2032 = vld [vmem:[%s1832 + $0x4] sm:$0xf]
        %v2033 = vld [vmem:[%s1832 + $0x8] sm:$0x1]
        %v2034 = vld [vmem:[%s1832 + $0xc] sm:$0xf]
        %v2035 = vld [vmem:[%s1832 + $0x10] sm:$0xf]
        %v2036 = vld [vmem:[%s1832 + $0x14] sm:$0x1]
        %v2037 = vld [vmem:[%s1832 + $0x18] sm:$0xf]
        %v2038 = vld [vmem:[%s1832 + $0x1c] sm:$0xf]
        %v2039 = vld [vmem:[%s1832 + $0x20] sm:$0x1]
        %v2040 = vld [vmem:[%s1832 + $0x24] sm:$0xf]
        %v2041 = vld [vmem:[%s1832 + $0x28] sm:$0xf]
        %v2042 = vld [vmem:[%s1832 + $0x2c] sm:$0x1]
        %v2043 = vld [vmem:[%s1832 + $0x30] sm:$0xf]
        %v2044 = vld [vmem:[%s1832 + $0x34] sm:$0xf]
        %v2045 = vld [vmem:[%s1832 + $0x38] sm:$0x1]
        %v2046 = vld [vmem:[%s1832 + $0x3c] sm:$0xf]
        %v2047 = vld [vmem:[%s1832 + $0x40] sm:$0xf]
        %v2048 = vld [vmem:[%s1832 + $0x44] sm:$0x1]
        %v2049 = vld [vmem:[%s1832 + $0x48] sm:$0xf]
        %v2050 = vld [vmem:[%s1832 + $0x4c] sm:$0xf]
        %v2051 = vld [vmem:[%s1832 + $0x50] sm:$0x1]
        %v2052 = vld [vmem:[%s1832 + $0x54] sm:$0xf]
        %v2053 = vld [vmem:[%s1832 + $0x58] sm:$0xf]
        %v2054 = vld [vmem:[%s1832 + $0x5c] sm:$0x1]
        %v2056 = vshrl.u32 %v2031, 16
        %v2058 = vrot.slane %v2056, 4
        %v2059 = vshll.u32 %v2031, 16
        %v2061 = vrot.slane %v2059, 5
        %v2062 = vor.u32 %v2058, %v2061
        %v2063 = vrot.slane %v2062, 4
        %v2065 = vshll.u32 %v2032, 16
        %v2067 = vrot.slane %v2065, 5
        %v2068 = vsel %vm239, %v2063, %v2067
        %v2069 = vshrl.u32 %v2032, 16
        %v2071 = vrot.slane %v2069, 4
        %v2072 = vor.u32 %v2071, %v2067
        %v2073 = vrot.slane %v2072, 4
        %v2075 = vshll.u32 %v2033, 16
        %v2077 = vrot.slane %v2075, 5
        %v2078 = vsel %vm239, %v2073, %v2077
        %v2080 = vshrl.u32 %v2034, 16
        %v2082 = vrot.slane %v2080, 4
        %v2083 = vshll.u32 %v2034, 16
        %v2085 = vrot.slane %v2083, 5
        %v2086 = vor.u32 %v2082, %v2085
        %v2087 = vrot.slane %v2086, 4
        %v2089 = vshll.u32 %v2035, 16
        %v2091 = vrot.slane %v2089, 5
        %v2092 = vsel %vm239, %v2087, %v2091
        %v2093 = vshrl.u32 %v2035, 16
        %v2095 = vrot.slane %v2093, 4
        %v2096 = vor.u32 %v2095, %v2091
        %v2097 = vrot.slane %v2096, 4
        %v2099 = vshll.u32 %v2036, 16
        %v2101 = vrot.slane %v2099, 5
        %v2102 = vsel %vm239, %v2097, %v2101
        %v2104 = vshrl.u32 %v2037, 16
        %v2106 = vrot.slane %v2104, 4
        %v2107 = vshll.u32 %v2037, 16
        %v2109 = vrot.slane %v2107, 5
        %v2110 = vor.u32 %v2106, %v2109
        %v2111 = vrot.slane %v2110, 4
        %v2113 = vshll.u32 %v2038, 16
        %v2115 = vrot.slane %v2113, 5
        %v2116 = vsel %vm239, %v2111, %v2115
        %v2117 = vshrl.u32 %v2038, 16
        %v2119 = vrot.slane %v2117, 4
        %v2120 = vor.u32 %v2119, %v2115
        %v2121 = vrot.slane %v2120, 4
        %v2123 = vshll.u32 %v2039, 16
        %v2125 = vrot.slane %v2123, 5
        %v2126 = vsel %vm239, %v2121, %v2125
        %v2128 = vshrl.u32 %v2040, 16
        %v2130 = vrot.slane %v2128, 4
        %v2131 = vshll.u32 %v2040, 16
        %v2133 = vrot.slane %v2131, 5
        %v2134 = vor.u32 %v2130, %v2133
        %v2135 = vrot.slane %v2134, 4
        %v2137 = vshll.u32 %v2041, 16
        %v2139 = vrot.slane %v2137, 5
        %v2140 = vsel %vm239, %v2135, %v2139
        %v2141 = vshrl.u32 %v2041, 16
        %v2143 = vrot.slane %v2141, 4
        %v2144 = vor.u32 %v2143, %v2139
        %v2145 = vrot.slane %v2144, 4
        %v2147 = vshll.u32 %v2042, 16
        %v2149 = vrot.slane %v2147, 5
        %v2150 = vsel %vm239, %v2145, %v2149
        %v2152 = vshrl.u32 %v2043, 16
        %v2154 = vrot.slane %v2152, 4
        %v2155 = vshll.u32 %v2043, 16
        %v2157 = vrot.slane %v2155, 5
        %v2158 = vor.u32 %v2154, %v2157
        %v2159 = vrot.slane %v2158, 4
        %v2161 = vshll.u32 %v2044, 16
        %v2163 = vrot.slane %v2161, 5
        %v2164 = vsel %vm239, %v2159, %v2163
        %v2165 = vshrl.u32 %v2044, 16
        %v2167 = vrot.slane %v2165, 4
        %v2168 = vor.u32 %v2167, %v2163
        %v2169 = vrot.slane %v2168, 4
        %v2171 = vshll.u32 %v2045, 16
        %v2173 = vrot.slane %v2171, 5
        %v2174 = vsel %vm239, %v2169, %v2173
        %v2176 = vshrl.u32 %v2046, 16
        %v2178 = vrot.slane %v2176, 4
        %v2179 = vshll.u32 %v2046, 16
        %v2181 = vrot.slane %v2179, 5
        %v2182 = vor.u32 %v2178, %v2181
        %v2183 = vrot.slane %v2182, 4
        %v2185 = vshll.u32 %v2047, 16
        %v2187 = vrot.slane %v2185, 5
        %v2188 = vsel %vm239, %v2183, %v2187
        %v2189 = vshrl.u32 %v2047, 16
        %v2191 = vrot.slane %v2189, 4
        %v2192 = vor.u32 %v2191, %v2187
        %v2193 = vrot.slane %v2192, 4
        %v2195 = vshll.u32 %v2048, 16
        %v2197 = vrot.slane %v2195, 5
        %v2198 = vsel %vm239, %v2193, %v2197
        %v2200 = vshrl.u32 %v2049, 16
        %v2202 = vrot.slane %v2200, 4
        %v2203 = vshll.u32 %v2049, 16
        %v2205 = vrot.slane %v2203, 5
        %v2206 = vor.u32 %v2202, %v2205
        %v2207 = vrot.slane %v2206, 4
        %v2209 = vshll.u32 %v2050, 16
        %v2211 = vrot.slane %v2209, 5
        %v2212 = vsel %vm239, %v2207, %v2211
        %v2213 = vshrl.u32 %v2050, 16
        %v2215 = vrot.slane %v2213, 4
        %v2216 = vor.u32 %v2215, %v2211
        %v2217 = vrot.slane %v2216, 4
        %v2219 = vshll.u32 %v2051, 16
        %v2221 = vrot.slane %v2219, 5
        %v2222 = vsel %vm239, %v2217, %v2221
        %v2224 = vshrl.u32 %v2052, 16
        %v2226 = vrot.slane %v2224, 4
        %v2227 = vshll.u32 %v2052, 16
        %v2229 = vrot.slane %v2227, 5
        %v2230 = vor.u32 %v2226, %v2229
        %v2231 = vrot.slane %v2230, 4
        %v2233 = vshll.u32 %v2053, 16
        %v2235 = vrot.slane %v2233, 5
        %v2236 = vsel %vm239, %v2231, %v2235
        %v2237 = vshrl.u32 %v2053, 16
        %v2239 = vrot.slane %v2237, 4
        %v2240 = vor.u32 %v2239, %v2235
        %v2241 = vrot.slane %v2240, 4
        %v2243 = vshll.u32 %v2054, 16
        %v2245 = vrot.slane %v2243, 5
        %v2246 = vsel %vm239, %v2241, %v2245
        %s2247 = scalar_lea.vmem %s1, 14
        %v2248 = vld [vmem:[%s2247] sm:$0x3]
        %v2249 = vunpack.c.l.b16 %v2068
        %v2250 = vunpack.c.l.b16 %v2078
        %v2251 = vunpack.c.l.b16 %v2092
        %v2252 = vunpack.c.l.b16 %v2102
        %v2253 = vunpack.c.l.b16 %v2116
        %v2254 = vunpack.c.l.b16 %v2126
        %v2255 = vunpack.c.l.b16 %v2140
        %v2256 = vunpack.c.l.b16 %v2150
        %v2257 = vunpack.c.l.b16 %v2164
        %v2258 = vunpack.c.l.b16 %v2174
        %v2259 = vunpack.c.l.b16 %v2188
        %v2260 = vunpack.c.l.b16 %v2198
        %v2261 = vunpack.c.l.b16 %v2212
        %v2262 = vunpack.c.l.b16 %v2222
        %v2263 = vunpack.c.l.b16 %v2236
        %v2264 = vunpack.c.l.b16 %v2246
        %v2265 = vpack.c.b16 %v2250, %v2249
        %v2266 = vpack.c.b16 %v2252, %v2251
        %v2267 = vpack.c.b16 %v2254, %v2253
        %v2268 = vpack.c.b16 %v2256, %v2255
        %v2269 = vpack.c.b16 %v2258, %v2257
        %v2270 = vpack.c.b16 %v2260, %v2259
        %v2271 = vpack.c.b16 %v2262, %v2261
        %v2272 = vpack.c.b16 %v2264, %v2263
        %v2274 = vsel %vm458, %v2265, 0
        %v2277 = vsel %vm458, %v2266, 0
        %v2280 = vsel %vm458, %v2267, 0
        %v2283 = vsel %vm458, %v2268, 0
        %v2286 = vsel %vm458, %v2269, 0
        %v2289 = vsel %vm458, %v2270, 0
        %v2292 = vsel %vm458, %v2271, 0
        %v2295 = vsel %vm458, %v2272, 0
        %v2298 = vsel %vm483, %v2248, 0
        %2300 = vmatprep.subr.bf16.mxu0 0
        %2301 = vmatpush1.bf16.msra.mxu0 %v2298
        %2302 = vmatprep.subr.bf16.mxu0 0
        %2303 = vmatpush1.bf16.msra.mxu0 0
        %2304 = vmatprep.subr.bf16.mxu0 0
        %2305 = vmatpush1.bf16.msra.mxu0 0
        %2306 = vmatprep.subr.bf16.mxu0 0
        %2307 = vmatpush1.bf16.msra.mxu0 0
        %2308 = vmatprep.subr.bf16.mxu0 0
        %2309 = vmatpush1.bf16.msra.mxu0 0
        %2310 = vmatprep.subr.bf16.mxu0 0
        %2311 = vmatpush1.bf16.msra.mxu0 0
        %2312 = vmatprep.subr.bf16.mxu0 0
        %2313 = vmatpush1.bf16.msra.mxu0 0
        %2314 = vmatprep.subr.bf16.mxu0 0
        %2315 = vmatpush1.bf16.msra.mxu0 0
        %2316 = vmatprep.subr.bf16.mxu0 0
        %2317 = vmatpush1.bf16.msra.mxu0 0
        %2318 = vmatprep.subr.bf16.mxu0 0
        %2319 = vmatpush1.bf16.msra.mxu0 0
        %2320 = vmatprep.subr.bf16.mxu0 0
        %2321 = vmatpush1.bf16.msra.mxu0 0
        %2322 = vmatprep.subr.bf16.mxu0 0
        %2323 = vmatpush1.bf16.msra.mxu0 0
        %2324 = vmatprep.subr.bf16.mxu0 0
        %2325 = vmatpush1.bf16.msra.mxu0 0
        %2326 = vmatprep.subr.bf16.mxu0 0
        %2327 = vmatpush1.bf16.msra.mxu0 0
        %2328 = vmatprep.subr.bf16.mxu0 0
        %2329 = vmatpush1.bf16.msra.mxu0 0
        %2330 = vmatprep.subr.bf16.mxu0 0
        %2331 = vmatpush1.bf16.msra.mxu0 0
        %2332 = vmatprep.mubr.bf16.mxu0 0
        %2333 = vmatmul.mubr.bf16.gmra.mrb[0].mxu0 %v2274
        %v2334 = vpop.f32.mrb[0].mxu0
        %v2335 = vadd.f32 0.0, %v2334
        %v2336 = vpop.f32.mrb[0].mxu0
        %v2337 = vpop.f32.mrb[0].mxu0
        %v2338 = vadd.f32 0.0, %v2337
        %v2339 = vpop.f32.mrb[0].mxu0
        %2340 = vmatprep.mubr.bf16.mxu0 0
        %2341 = vmatmul.mubr.bf16.gmra.mrb[0].mxu0 %v2277
        %v2342 = vpop.f32.mrb[0].mxu0
        %v2343 = vadd.f32 0.0, %v2342
        %v2344 = vpop.f32.mrb[0].mxu0
        %v2345 = vpop.f32.mrb[0].mxu0
        %v2346 = vadd.f32 0.0, %v2345
        %v2347 = vpop.f32.mrb[0].mxu0
        %2348 = vmatprep.mubr.bf16.mxu0 0
        %2349 = vmatmul.mubr.bf16.gmra.mrb[0].mxu0 %v2280
        %v2350 = vpop.f32.mrb[0].mxu0
        %v2351 = vadd.f32 0.0, %v2350
        %v2352 = vpop.f32.mrb[0].mxu0
        %v2353 = vpop.f32.mrb[0].mxu0
        %v2354 = vadd.f32 0.0, %v2353
        %v2355 = vpop.f32.mrb[0].mxu0
        %2356 = vmatprep.mubr.bf16.mxu0 0
        %2357 = vmatmul.mubr.bf16.gmra.mrb[0].mxu0 %v2283
        %v2358 = vpop.f32.mrb[0].mxu0
        %v2359 = vadd.f32 0.0, %v2358
        %v2360 = vpop.f32.mrb[0].mxu0
        %v2361 = vpop.f32.mrb[0].mxu0
        %v2362 = vadd.f32 0.0, %v2361
        %v2363 = vpop.f32.mrb[0].mxu0
        %2364 = vmatprep.mubr.bf16.mxu0 0
        %2365 = vmatmul.mubr.bf16.gmra.mrb[0].mxu0 %v2286
        %v2366 = vpop.f32.mrb[0].mxu0
        %v2367 = vadd.f32 0.0, %v2366
        %v2368 = vpop.f32.mrb[0].mxu0
        %v2369 = vpop.f32.mrb[0].mxu0
        %v2370 = vadd.f32 0.0, %v2369
        %v2371 = vpop.f32.mrb[0].mxu0
        %2372 = vmatprep.mubr.bf16.mxu0 0
        %2373 = vmatmul.mubr.bf16.gmra.mrb[0].mxu0 %v2289
        %v2374 = vpop.f32.mrb[0].mxu0
        %v2375 = vadd.f32 0.0, %v2374
        %v2376 = vpop.f32.mrb[0].mxu0
        %v2377 = vpop.f32.mrb[0].mxu0
        %v2378 = vadd.f32 0.0, %v2377
        %v2379 = vpop.f32.mrb[0].mxu0
        %2380 = vmatprep.mubr.bf16.mxu0 0
        %2381 = vmatmul.mubr.bf16.gmra.mrb[0].mxu0 %v2292
        %v2382 = vpop.f32.mrb[0].mxu0
        %v2383 = vadd.f32 0.0, %v2382
        %v2384 = vpop.f32.mrb[0].mxu0
        %v2385 = vpop.f32.mrb[0].mxu0
        %v2386 = vadd.f32 0.0, %v2385
        %v2387 = vpop.f32.mrb[0].mxu0
        %2388 = vmatprep.mubr.bf16.mxu0 0
        %2389 = vmatmul.mubr.bf16.gmra.mrb[0].mxu0 %v2295
        %v2390 = vpop.f32.mrb[0].mxu0
        %v2391 = vadd.f32 0.0, %v2390
        %v2392 = vpop.f32.mrb[0].mxu0
        %v2393 = vpop.f32.mrb[0].mxu0
        %v2394 = vadd.f32 0.0, %v2393
        %v2395 = vpop.f32.mrb[0].mxu0
        %2396 = vdwg.mxu0
        %v2397 = vadd.f32 %v2015, %v2335
        %v2398 = vadd.f32 %v2016, %v2338
        %v2399 = vadd.f32 %v2017, %v2343
        %v2400 = vadd.f32 %v2018, %v2346
        %v2401 = vadd.f32 %v2019, %v2351
        %v2402 = vadd.f32 %v2020, %v2354
        %v2403 = vadd.f32 %v2021, %v2359
        %v2404 = vadd.f32 %v2022, %v2362
        %v2405 = vadd.f32 %v2023, %v2367
        %v2406 = vadd.f32 %v2024, %v2370
        %v2407 = vadd.f32 %v2025, %v2375
        %v2408 = vadd.f32 %v2026, %v2378
        %v2409 = vadd.f32 %v2027, %v2383
        %v2410 = vadd.f32 %v2028, %v2386
        %v2411 = vadd.f32 %v2029, %v2391
        %v2412 = vadd.f32 %v2030, %v2394
        %v2413 = vld [vmem:[%s1832] sm:$0xe]
        %v2414 = vld [vmem:[%s1832 + $0xc] sm:$0xe]
        %v2415 = vld [vmem:[%s1832 + $0x18] sm:$0xe]
        %v2416 = vld [vmem:[%s1832 + $0x24] sm:$0xe]
        %v2417 = vld [vmem:[%s1832 + $0x30] sm:$0xe]
        %v2418 = vld [vmem:[%s1832 + $0x3c] sm:$0xe]
        %v2419 = vld [vmem:[%s1832 + $0x48] sm:$0xe]
        %v2420 = vld [vmem:[%s1832 + $0x54] sm:$0xe]
        %v2445 = vrot.slane %v2413, 5
        %v2446 = vrot.slane %v2445, 4
        %v2447 = vrot.slane %v2032, 5
        %v2448 = vsel %vm774, %v2446, %v2447
        %v2449 = vrot.slane %v2447, 4
        %v2450 = vrot.slane %v2033, 5
        %v2451 = vsel %vm774, %v2449, %v2450
        %v2452 = vrot.slane %v2414, 5
        %v2453 = vrot.slane %v2452, 4
        %v2454 = vrot.slane %v2035, 5
        %v2455 = vsel %vm774, %v2453, %v2454
        %v2456 = vrot.slane %v2454, 4
        %v2457 = vrot.slane %v2036, 5
        %v2458 = vsel %vm774, %v2456, %v2457
        %v2459 = vrot.slane %v2415, 5
        %v2460 = vrot.slane %v2459, 4
        %v2461 = vrot.slane %v2038, 5
        %v2462 = vsel %vm774, %v2460, %v2461
        %v2463 = vrot.slane %v2461, 4
        %v2464 = vrot.slane %v2039, 5
        %v2465 = vsel %vm774, %v2463, %v2464
        %v2466 = vrot.slane %v2416, 5
        %v2467 = vrot.slane %v2466, 4
        %v2468 = vrot.slane %v2041, 5
        %v2469 = vsel %vm774, %v2467, %v2468
        %v2470 = vrot.slane %v2468, 4
        %v2471 = vrot.slane %v2042, 5
        %v2472 = vsel %vm774, %v2470, %v2471
        %v2473 = vrot.slane %v2417, 5
        %v2474 = vrot.slane %v2473, 4
        %v2475 = vrot.slane %v2044, 5
        %v2476 = vsel %vm774, %v2474, %v2475
        %v2477 = vrot.slane %v2475, 4
        %v2478 = vrot.slane %v2045, 5
        %v2479 = vsel %vm774, %v2477, %v2478
        %v2480 = vrot.slane %v2418, 5
        %v2481 = vrot.slane %v2480, 4
        %v2482 = vrot.slane %v2047, 5
        %v2483 = vsel %vm774, %v2481, %v2482
        %v2484 = vrot.slane %v2482, 4
        %v2485 = vrot.slane %v2048, 5
        %v2486 = vsel %vm774, %v2484, %v2485
        %v2487 = vrot.slane %v2419, 5
        %v2488 = vrot.slane %v2487, 4
        %v2489 = vrot.slane %v2050, 5
        %v2490 = vsel %vm774, %v2488, %v2489
        %v2491 = vrot.slane %v2489, 4
        %v2492 = vrot.slane %v2051, 5
        %v2493 = vsel %vm774, %v2491, %v2492
        %v2494 = vrot.slane %v2420, 5
        %v2495 = vrot.slane %v2494, 4
        %v2496 = vrot.slane %v2053, 5
        %v2497 = vsel %vm774, %v2495, %v2496
        %v2498 = vrot.slane %v2496, 4
        %v2499 = vrot.slane %v2054, 5
        %v2500 = vsel %vm774, %v2498, %v2499
        %s2501 = scalar_lea.vmem %s1, 16
        %v2502 = vld [vmem:[%s2501] sm:$0x3]
        %v2503 = vunpack.c.l.b16 %v2448
        %v2504 = vunpack.c.l.b16 %v2451
        %v2505 = vunpack.c.l.b16 %v2455
        %v2506 = vunpack.c.l.b16 %v2458
        %v2507 = vunpack.c.l.b16 %v2462
        %v2508 = vunpack.c.l.b16 %v2465
        %v2509 = vunpack.c.l.b16 %v2469
        %v2510 = vunpack.c.l.b16 %v2472
        %v2511 = vunpack.c.l.b16 %v2476
        %v2512 = vunpack.c.l.b16 %v2479
        %v2513 = vunpack.c.l.b16 %v2483
        %v2514 = vunpack.c.l.b16 %v2486
        %v2515 = vunpack.c.l.b16 %v2490
        %v2516 = vunpack.c.l.b16 %v2493
        %v2517 = vunpack.c.l.b16 %v2497
        %v2518 = vunpack.c.l.b16 %v2500
        %v2519 = vpack.c.b16 %v2504, %v2503
        %v2520 = vpack.c.b16 %v2506, %v2505
        %v2521 = vpack.c.b16 %v2508, %v2507
        %v2522 = vpack.c.b16 %v2510, %v2509
        %v2523 = vpack.c.b16 %v2512, %v2511
        %v2524 = vpack.c.b16 %v2514, %v2513
        %v2525 = vpack.c.b16 %v2516, %v2515
        %v2526 = vpack.c.b16 %v2518, %v2517
        %v2528 = vsel %vm458, %v2519, 0
        %v2531 = vsel %vm458, %v2520, 0
        %v2534 = vsel %vm458, %v2521, 0
        %v2537 = vsel %vm458, %v2522, 0
        %v2540 = vsel %vm458, %v2523, 0
        %v2543 = vsel %vm458, %v2524, 0
        %v2546 = vsel %vm458, %v2525, 0
        %v2549 = vsel %vm458, %v2526, 0
        %v2552 = vsel %vm483, %v2502, 0
        %2554 = vmatprep.subr.bf16.mxu0 0
        %2555 = vmatpush1.bf16.msra.mxu0 %v2552
        %2556 = vmatprep.subr.bf16.mxu0 0
        %2557 = vmatpush1.bf16.msra.mxu0 0
        %2558 = vmatprep.subr.bf16.mxu0 0
        %2559 = vmatpush1.bf16.msra.mxu0 0
        %2560 = vmatprep.subr.bf16.mxu0 0
        %2561 = vmatpush1.bf16.msra.mxu0 0
        %2562 = vmatprep.subr.bf16.mxu0 0
        %2563 = vmatpush1.bf16.msra.mxu0 0
        %2564 = vmatprep.subr.bf16.mxu0 0
        %2565 = vmatpush1.bf16.msra.mxu0 0
        %2566 = vmatprep.subr.bf16.mxu0 0
        %2567 = vmatpush1.bf16.msra.mxu0 0
        %2568 = vmatprep.subr.bf16.mxu0 0
        %2569 = vmatpush1.bf16.msra.mxu0 0
        %2570 = vmatprep.subr.bf16.mxu0 0
        %2571 = vmatpush1.bf16.msra.mxu0 0
        %2572 = vmatprep.subr.bf16.mxu0 0
        %2573 = vmatpush1.bf16.msra.mxu0 0
        %2574 = vmatprep.subr.bf16.mxu0 0
        %2575 = vmatpush1.bf16.msra.mxu0 0
        %2576 = vmatprep.subr.bf16.mxu0 0
        %2577 = vmatpush1.bf16.msra.mxu0 0
        %2578 = vmatprep.subr.bf16.mxu0 0
        %2579 = vmatpush1.bf16.msra.mxu0 0
        %2580 = vmatprep.subr.bf16.mxu0 0
        %2581 = vmatpush1.bf16.msra.mxu0 0
        %2582 = vmatprep.subr.bf16.mxu0 0
        %2583 = vmatpush1.bf16.msra.mxu0 0
        %2584 = vmatprep.subr.bf16.mxu0 0
        %2585 = vmatpush1.bf16.msra.mxu0 0
        %2586 = vmatprep.mubr.bf16.mxu0 0
        %2587 = vmatmul.mubr.bf16.gmra.mrb[0].mxu0 %v2528
        %v2588 = vpop.f32.mrb[0].mxu0
        %v2589 = vadd.f32 0.0, %v2588
        %v2590 = vpop.f32.mrb[0].mxu0
        %v2591 = vpop.f32.mrb[0].mxu0
        %v2592 = vadd.f32 0.0, %v2591
        %v2593 = vpop.f32.mrb[0].mxu0
        %2594 = vmatprep.mubr.bf16.mxu0 0
        %2595 = vmatmul.mubr.bf16.gmra.mrb[0].mxu0 %v2531
        %v2596 = vpop.f32.mrb[0].mxu0
        %v2597 = vadd.f32 0.0, %v2596
        %v2598 = vpop.f32.mrb[0].mxu0
        %v2599 = vpop.f32.mrb[0].mxu0
        %v2600 = vadd.f32 0.0, %v2599
        %v2601 = vpop.f32.mrb[0].mxu0
        %2602 = vmatprep.mubr.bf16.mxu0 0
        %2603 = vmatmul.mubr.bf16.gmra.mrb[0].mxu0 %v2534
        %v2604 = vpop.f32.mrb[0].mxu0
        %v2605 = vadd.f32 0.0, %v2604
        %v2606 = vpop.f32.mrb[0].mxu0
        %v2607 = vpop.f32.mrb[0].mxu0
        %v2608 = vadd.f32 0.0, %v2607
        %v2609 = vpop.f32.mrb[0].mxu0
        %2610 = vmatprep.mubr.bf16.mxu0 0
        %2611 = vmatmul.mubr.bf16.gmra.mrb[0].mxu0 %v2537
        %v2612 = vpop.f32.mrb[0].mxu0
        %v2613 = vadd.f32 0.0, %v2612
        %v2614 = vpop.f32.mrb[0].mxu0
        %v2615 = vpop.f32.mrb[0].mxu0
        %v2616 = vadd.f32 0.0, %v2615
        %v2617 = vpop.f32.mrb[0].mxu0
        %2618 = vmatprep.mubr.bf16.mxu0 0
        %2619 = vmatmul.mubr.bf16.gmra.mrb[0].mxu0 %v2540
        %v2620 = vpop.f32.mrb[0].mxu0
        %v2621 = vadd.f32 0.0, %v2620
        %v2622 = vpop.f32.mrb[0].mxu0
        %v2623 = vpop.f32.mrb[0].mxu0
        %v2624 = vadd.f32 0.0, %v2623
        %v2625 = vpop.f32.mrb[0].mxu0
        %2626 = vmatprep.mubr.bf16.mxu0 0
        %2627 = vmatmul.mubr.bf16.gmra.mrb[0].mxu0 %v2543
        %v2628 = vpop.f32.mrb[0].mxu0
        %v2629 = vadd.f32 0.0, %v2628
        %v2630 = vpop.f32.mrb[0].mxu0
        %v2631 = vpop.f32.mrb[0].mxu0
        %v2632 = vadd.f32 0.0, %v2631
        %v2633 = vpop.f32.mrb[0].mxu0
        %2634 = vmatprep.mubr.bf16.mxu0 0
        %2635 = vmatmul.mubr.bf16.gmra.mrb[0].mxu0 %v2546
        %v2636 = vpop.f32.mrb[0].mxu0
        %v2637 = vadd.f32 0.0, %v2636
        %v2638 = vpop.f32.mrb[0].mxu0
        %v2639 = vpop.f32.mrb[0].mxu0
        %v2640 = vadd.f32 0.0, %v2639
        %v2641 = vpop.f32.mrb[0].mxu0
        %2642 = vmatprep.mubr.bf16.mxu0 0
        %2643 = vmatmul.mubr.bf16.gmra.mrb[0].mxu0 %v2549
        %v2644 = vpop.f32.mrb[0].mxu0
        %v2645 = vadd.f32 0.0, %v2644
        %v2646 = vpop.f32.mrb[0].mxu0
        %v2647 = vpop.f32.mrb[0].mxu0
        %v2648 = vadd.f32 0.0, %v2647
        %v2649 = vpop.f32.mrb[0].mxu0
        %2650 = vdwg.mxu0
        %v2651 = vadd.f32 %v2397, %v2589
        %v2652 = vadd.f32 %v2398, %v2592
        %v2653 = vadd.f32 %v2399, %v2597
        %v2654 = vadd.f32 %v2400, %v2600
        %v2655 = vadd.f32 %v2401, %v2605
        %v2656 = vadd.f32 %v2402, %v2608
        %v2657 = vadd.f32 %v2403, %v2613
        %v2658 = vadd.f32 %v2404, %v2616
        %v2659 = vadd.f32 %v2405, %v2621
        %v2660 = vadd.f32 %v2406, %v2624
        %v2661 = vadd.f32 %v2407, %v2629
        %v2662 = vadd.f32 %v2408, %v2632
        %v2663 = vadd.f32 %v2409, %v2637
        %v2664 = vadd.f32 %v2410, %v2640
        %v2665 = vadd.f32 %v2411, %v2645
        %v2666 = vadd.f32 %v2412, %v2648
        %v2667 = vpack.c.bf16 %v2652, %v2651
        %v2668 = vpack.c.bf16 %v2654, %v2653
        %v2669 = vpack.c.bf16 %v2656, %v2655
        %v2670 = vpack.c.bf16 %v2658, %v2657
        %v2671 = vpack.c.bf16 %v2660, %v2659
        %v2672 = vpack.c.bf16 %v2662, %v2661
        %v2673 = vpack.c.bf16 %v2664, %v2663
        %v2674 = vpack.c.bf16 %v2666, %v2665
        %v2683 = vunpack.c.l.b16 %v2667
        %v2684 = vunpack.c.h.b16 %v2667
        %v2685 = vunpack.c.l.b16 %v2668
        %v2686 = vunpack.c.h.b16 %v2668
        %v2687 = vunpack.c.l.b16 %v2669
        %v2688 = vunpack.c.h.b16 %v2669
        %v2689 = vunpack.c.l.b16 %v2670
        %v2690 = vunpack.c.h.b16 %v2670
        %v2691 = vunpack.c.l.b16 %v2671
        %v2692 = vunpack.c.h.b16 %v2671
        %v2693 = vunpack.c.l.b16 %v2672
        %v2694 = vunpack.c.h.b16 %v2672
        %v2695 = vunpack.c.l.b16 %v2673
        %v2696 = vunpack.c.h.b16 %v2673
        %v2697 = vunpack.c.l.b16 %v2674
        %v2698 = vunpack.c.h.b16 %v2674
        %v2699 = vpack.c.b16 %v2683, %v2683
        %v2700 = vpack.c.b16 %v2684, %v2684
        %v2701 = vpack.c.b16 %v2685, %v2685
        %v2702 = vpack.c.b16 %v2686, %v2686
        %v2703 = vpack.c.b16 %v2687, %v2687
        %v2704 = vpack.c.b16 %v2688, %v2688
        %v2705 = vpack.c.b16 %v2689, %v2689
        %v2706 = vpack.c.b16 %v2690, %v2690
        %v2707 = vpack.c.b16 %v2691, %v2691
        %v2708 = vpack.c.b16 %v2692, %v2692
        %v2709 = vpack.c.b16 %v2693, %v2693
        %v2710 = vpack.c.b16 %v2694, %v2694
        %v2711 = vpack.c.b16 %v2695, %v2695
        %v2712 = vpack.c.b16 %v2696, %v2696
        %v2713 = vpack.c.b16 %v2697, %v2697
        %v2714 = vpack.c.b16 %v2698, %v2698
        %2731 = vst [vmem:[%s193] sm:$0xf] %v2699
        %2732 = vst [vmem:[%s193 + $0x4] sm:$0xf] %v2700
        %2733 = vst [vmem:[%s193 + $0x8] sm:$0xf] %v2701
        %2734 = vst [vmem:[%s193 + $0xc] sm:$0xf] %v2702
        %2735 = vst [vmem:[%s193 + $0x10] sm:$0xf] %v2703
        %2736 = vst [vmem:[%s193 + $0x14] sm:$0xf] %v2704
        %2737 = vst [vmem:[%s193 + $0x18] sm:$0xf] %v2705
        %2738 = vst [vmem:[%s193 + $0x1c] sm:$0xf] %v2706
        %2739 = vst [vmem:[%s193 + $0x20] sm:$0xf] %v2707
        %2740 = vst [vmem:[%s193 + $0x24] sm:$0xf] %v2708
        %2741 = vst [vmem:[%s193 + $0x28] sm:$0xf] %v2709
        %2742 = vst [vmem:[%s193 + $0x2c] sm:$0xf] %v2710
        %2743 = vst [vmem:[%s193 + $0x30] sm:$0xf] %v2711
        %2744 = vst [vmem:[%s193 + $0x34] sm:$0xf] %v2712
        %2745 = vst [vmem:[%s193 + $0x38] sm:$0xf] %v2713
        %2746 = vst [vmem:[%s193 + $0x3c] sm:$0xf] %v2714
        %v2747 = vadd.f32 %v2651, %v2652
        %v2748 = vadd.f32 %v2747, %v2653
        %v2749 = vadd.f32 %v2748, %v2654
        %v2750 = vadd.f32 %v2749, %v2655
        %v2751 = vadd.f32 %v2750, %v2656
        %v2752 = vadd.f32 %v2751, %v2657
        %v2753 = vadd.f32 %v2752, %v2658
        %v2754 = vadd.f32 %v2753, %v2659
        %v2755 = vadd.f32 %v2754, %v2660
        %v2756 = vadd.f32 %v2755, %v2661
        %v2757 = vadd.f32 %v2756, %v2662
        %v2758 = vadd.f32 %v2757, %v2663
        %v2759 = vadd.f32 %v2758, %v2664
        %v2760 = vadd.f32 %v2759, %v2665
        %v2761 = vadd.f32 %v2760, %v2666
        %v2762 = vrot.slane %v2761, 4
        %v2763 = vadd.f32 %v2761, %v2762
        %v2764 = vrot.slane %v2763, 2
        %v2765 = vadd.f32 %v2763, %v2764
        %v2766 = vrot.slane %v2765, 1
        %v2767 = vadd.f32 %v2765, %v2766
        %2768 = vst [vmem:[%s200] sm:$0x1] %v2767
        %v2769 = vmul.f32 %v2651, %v2651
        %v2770 = vmul.f32 %v2652, %v2652
        %v2771 = vmul.f32 %v2653, %v2653
        %v2772 = vmul.f32 %v2654, %v2654
        %v2773 = vmul.f32 %v2655, %v2655
        %v2774 = vmul.f32 %v2656, %v2656
        %v2775 = vmul.f32 %v2657, %v2657
        %v2776 = vmul.f32 %v2658, %v2658
        %v2777 = vmul.f32 %v2659, %v2659
        %v2778 = vmul.f32 %v2660, %v2660
        %v2779 = vmul.f32 %v2661, %v2661
        %v2780 = vmul.f32 %v2662, %v2662
        %v2781 = vmul.f32 %v2663, %v2663
        %v2782 = vmul.f32 %v2664, %v2664
        %v2783 = vmul.f32 %v2665, %v2665
        %v2784 = vmul.f32 %v2666, %v2666
        %v2785 = vadd.f32 %v2769, %v2770
        %v2786 = vadd.f32 %v2785, %v2771
        %v2787 = vadd.f32 %v2786, %v2772
        %v2788 = vadd.f32 %v2787, %v2773
        %v2789 = vadd.f32 %v2788, %v2774
        %v2790 = vadd.f32 %v2789, %v2775
        %v2791 = vadd.f32 %v2790, %v2776
        %v2792 = vadd.f32 %v2791, %v2777
        %v2793 = vadd.f32 %v2792, %v2778
        %v2794 = vadd.f32 %v2793, %v2779
        %v2795 = vadd.f32 %v2794, %v2780
        %v2796 = vadd.f32 %v2795, %v2781
        %v2797 = vadd.f32 %v2796, %v2782
        %v2798 = vadd.f32 %v2797, %v2783
        %v2799 = vadd.f32 %v2798, %v2784
        %v2800 = vrot.slane %v2799, 4
        %v2801 = vadd.f32 %v2799, %v2800
        %v2802 = vrot.slane %v2801, 2
        %v2803 = vadd.f32 %v2801, %v2802
        %v2804 = vrot.slane %v2803, 1
        %v2805 = vadd.f32 %v2803, %v2804
        %2806 = vst [vmem:[%s200 + $0x1] sm:$0x1] %v2805
        %s2807 = sand.u32 %s92, 1
        %s2808 = scalar_lea.sflag [#allocation3], %s2807
        %s2809 = sand.u32 %s92, 1
        %s2810 = smul.addr %s2809, 64
        %s2811 = scalar_lea.vmem [#allocation2], %s2810
        %s2812 = sand.u32 %s120, 1
        %s2813 = scalar_lea.sflag [#allocation5], %s2812
        %s2814 = sand.u32 %s120, 1
        %s2815 = smul.addr %s2814, 2
        %s2816 = scalar_lea.vmem [#allocation4], %s2815
        // Predicated region
        $region29: #{tpu_custom_call.1} parent=27 // pred_check
          %p2817 = pneg %p102
        $region30: #{tpu_custom_call.1} parent=27 // pred_check_branch
          %2819 = sbr.rel (%p2817) target = $region32
        $region31: #{tpu_custom_call.1} parent=27 // pred_region
          %s2820 = smul.u32 8, %s26
          %s2822 = ssub.s32 1024, 1024
          %2823 = vsyncadd %s2808, %s2822
          %s2824 = smul.addr %s2820, 2
          %s2825 = smul.addr %s25, 32
          %s2826 = sadd.s32 %s2824, %s2825
          %s2827 = smul.addr %s2826, 64
          %s2828 = scalar_lea.hbm %s2, %s2827
          %s2829 = sshll.u32 %s2811, 4
          %s2830 = int_to_ptr.vmem [resolvable:$true] %s2829
          %2835 = dma.vmem_to_hbm [thread:$0]  %s2830, 1024, %s2828, %s2808, 64, 64, 4
        $region32: #{tpu_custom_call.1} parent=27 // pred_fallthru
          _
        // Predicated region
        $region33: #{tpu_custom_call.1} parent=27 // pred_check
          %p2836 = pneg %p130
        $region34: #{tpu_custom_call.1} parent=27 // pred_check_branch
          %2838 = sbr.rel (%p2836) target = $region36
        $region35: #{tpu_custom_call.1} parent=27 // pred_region
          %s2840 = ssub.s32 32, 32
          %2841 = vsyncadd %s2813, %s2840
          %s2842 = smul.addr %s25, 2
          %s2843 = sadd.s32 %s26, %s2842
          %s2844 = smul.addr %s2843, 32
          %s2845 = scalar_lea.hbm %s3, %s2844
          %s2847 = sshll.u32 %s2816, 4
          %s2848 = int_to_ptr.vmem [resolvable:$true] %s2847
          %2850 = dma.vmem_to_hbm [thread:$0]  %s2848, 32, %s2845, %s2813
        $region36: #{tpu_custom_call.1} parent=27 // pred_fallthru
          _
      $region28: #{tpu_custom_call.1} parent=5 // pred_fallthru
        _
      %p2851 = scmp.le.s32.totalorder 2, %s16
      // Predicated region
      $region37: #{tpu_custom_call.1} parent=5 // pred_check
        %p2852 = pneg %p2851
      $region38: #{tpu_custom_call.1} parent=5 // pred_check_branch
        %2854 = sbr.rel (%p2852) target = $region40
      $region39: #{tpu_custom_call.1} parent=5 // pred_region
        %s2855 = ssub.s32 %s16, 2
        // Predicated region
        $region41: #{tpu_custom_call.1} parent=39 // pred_check
          %p2856 = pneg %p108
        $region42: #{tpu_custom_call.1} parent=39 // pred_check_branch
          %2858 = sbr.rel (%p2856) target = $region44
        $region43: #{tpu_custom_call.1} parent=39 // pred_region
          %s2859 = sand.u32 %s93, 1
          %s2860 = scalar_lea.sflag [#allocation3], %s2859
          %s2861 = sand.u32 %s93, 1
          %s2862 = smul.addr %s2861, 64
          %s2863 = scalar_lea.vmem [#allocation2], %s2862
          %2864 = dma.done %s2860, 1024
        $region44: #{tpu_custom_call.1} parent=39 // pred_fallthru
          _
        // Predicated region
        $region45: #{tpu_custom_call.1} parent=39 // pred_check
          %p2865 = pneg %p136
        $region46: #{tpu_custom_call.1} parent=39 // pred_check_branch
          %2867 = sbr.rel (%p2865) target = $region48
        $region47: #{tpu_custom_call.1} parent=39 // pred_region
          %s2868 = sand.u32 %s121, 1
          %s2869 = scalar_lea.sflag [#allocation5], %s2868
          %s2870 = sand.u32 %s121, 1
          %s2871 = smul.addr %s2870, 2
          %s2872 = scalar_lea.vmem [#allocation4], %s2871
          %2873 = dma.done %s2869, 32
        $region48: #{tpu_custom_call.1} parent=39 // pred_fallthru
          _
      $region40: #{tpu_custom_call.1} parent=5 // pred_fallthru
        _
    $region6: #{tpu_custom_call.1} parent=1 // loop_footer
      %s20 = sadd.s32 1, %s16
    $region7: #{tpu_custom_call.1} parent=1 // loop_footer_branch
      %15 = sbr.rel target = $region3
    $region8: #{tpu_custom_call.1} parent=1 // loop_exit
      _
    %2874 = vsyncpa [#allocation3], 1
    %s2875 = scalar_lea.sflag [#allocation3], 1
    %2876 = vsyncpa %s2875, 1
    %2877 = vsyncpa [#allocation5], 1
    %s2878 = scalar_lea.sflag [#allocation5], 1
    %2879 = vsyncpa %s2878, 1

</llo_original>
